<compile_context>
chip_gen: v7x
topology: tpu7x:2x2x1
jax: 0.10.0
libtpu: 0.0.40
codegen_flags: <defaults>
</compile_context>

<pallas_src>
import functools

import jax
import jax.numpy as jnp
from jax.experimental import pallas as pl
from jax.experimental.pallas import tpu as pltpu


def _lstm_bch_kernel(seq_ref, wih_ref, whh_ref, b_ref, wout_ref, bout_ref,
                     out_ref, hbuf_ref):
    """Full (batch=1) LSTM recurrence + output Linear, resident in VMEM.

    seq_ref  : (T, D)        input sequence
    wih_ref  : (D, 4*GP)     W_ih^T, gate blocks [i|f|g|o] each padded H->GP
    whh_ref  : (H, 4*GP)     W_hh^T, same padded gate-block layout
    b_ref    : (1, 4*GP)     b_ih + b_hh, same padded gate-block layout
    wout_ref : (H, Bpad)     W_out^T zero-padded to lane-dense width
    bout_ref : (1, Bpad)     b_out zero-padded
    out_ref  : (T, Bpad)     bch_out (padded)
    hbuf_ref : (T, H)        scratch: all hidden states (lstm_out)
    """
    T = seq_ref.shape[0]
    H = whh_ref.shape[0]
    GP = whh_ref.shape[1] // 4   # padded per-gate lane width (multiple of 128)

    # Hoisted input projection: one (T, D) @ (D, 4*GP) matmul + bias, kept in
    # vregs (no VMEM scratch round-trip).
    xproj = (jnp.dot(seq_ref[...], wih_ref[...],
                     preferred_element_type=jnp.float32)
             + b_ref[...])                                       # (T, 4*GP)

    # Load the recurrent weights once; reused across all unrolled steps.
    # TODO(synk): stage via pltpu.matmul_push_rhs to keep the RHS in the MXU.
    whh = whh_ref[...]                                           # (H, 4*GP)

    h = jnp.zeros((1, H), jnp.float32)
    c = jnp.zeros((1, H), jnp.float32)

    # Statically unrolled recurrence (T is small and compile-time constant):
    # every gate slice below starts at a 128-aligned lane offset, so no
    # cross-lane rolls sit on the serial h/c dependency chain.
    for t in range(T):
        gates = xproj[t:t + 1, :] + jnp.dot(
            h, whh, preferred_element_type=jnp.float32)          # (1, 4*GP)
        i_g = jax.nn.sigmoid(gates[:, 0 * GP:0 * GP + H])
        f_g = jax.nn.sigmoid(gates[:, 1 * GP:1 * GP + H])
        g_g = jnp.tanh(gates[:, 2 * GP:2 * GP + H])
        o_g = jax.nn.sigmoid(gates[:, 3 * GP:3 * GP + H])
        c = f_g * c + i_g * g_g
        h = o_g * jnp.tanh(c)
        hbuf_ref[pl.ds(t, 1), :] = h                             # lstm_out[t]

    # hidden2bch: (T, H) @ (H, Bpad) + (1, Bpad) -> lane-dense (T, Bpad) store.
    out_ref[...] = (jnp.dot(hbuf_ref[...], wout_ref[...],
                            preferred_element_type=jnp.float32)
                    + bout_ref[...])


def _round_up(x, m):
    return ((x + m - 1) // m) * m


def prepare_lstm_bch_weights(w_ih_t, w_hh_t, bias, w_out_t, b_out):
    """One-time weight prep (run OUTSIDE the per-call hot path).

    Inputs are in PyTorch layout / gate order:
      w_ih_t : (D, 4H)  W_ih^T, gate blocks [i|f|g|o]
      w_hh_t : (H, 4H)  W_hh^T, gate blocks [i|f|g|o]
      bias   : (1, 4H)  b_ih + b_hh
      w_out_t: (H, B)   hidden2bch weight^T
      b_out  : (1, B)   hidden2bch bias

    Pads each gate block's columns from H to a 128-lane-aligned width (zero
    fill) and pads the output Linear to a lane-dense width.  Zero padding is
    exact: padded gate lanes get pre-activation 0 and are never read.
    """
    H = w_hh_t.shape[0]
    B = w_out_t.shape[1]
    gp = max(128, _round_up(H, 128))     # padded per-gate lane width
    b_pad = max(128, _round_up(B, 128))  # padded output lane width

    def pad_gate_blocks(w):
        blocks = [w[:, k * H:(k + 1) * H] for k in range(4)]
        blocks = [jnp.pad(blk, ((0, 0), (0, gp - H))) for blk in blocks]
        return jnp.concatenate(blocks, axis=1)

    w_ih_p = pad_gate_blocks(w_ih_t).astype(jnp.float32)
    w_hh_p = pad_gate_blocks(w_hh_t).astype(jnp.float32)
    bias_p = pad_gate_blocks(bias).astype(jnp.float32)
    w_out_p = jnp.pad(w_out_t, ((0, 0), (0, b_pad - B))).astype(jnp.float32)
    b_out_p = jnp.pad(b_out, ((0, 0), (0, b_pad - B))).astype(jnp.float32)

    params = (w_ih_p, w_hh_p, bias_p, w_out_p, b_out_p)
    return jax.device_put(params), B


@functools.partial(jax.jit, static_argnames=("bch_dim",))
def lstm_bch_forward(seq, w_ih_p, w_hh_p, bias_p, w_out_p, b_out_p, *, bch_dim):
    """seq: (T, D) float32.  Weights must come from prepare_lstm_bch_weights."""
    T, _ = seq.shape
    H = w_hh_p.shape[0]
    b_pad = w_out_p.shape[1]

    vmem = pl.BlockSpec(memory_space=pltpu.MemorySpace.VMEM)
    out_padded = pl.pallas_call(
        _lstm_bch_kernel,
        out_shape=jax.ShapeDtypeStruct((T, b_pad), jnp.float32),
        in_specs=[vmem] * 6,
        out_specs=vmem,
        scratch_shapes=[pltpu.VMEM((T, H), jnp.float32)],   # lstm_out buffer
    )(seq.astype(jnp.float32), w_ih_p, w_hh_p, bias_p, w_out_p, b_out_p)
    return out_padded[:, :bch_dim]


def _reference_lstm_bch(seq, w_ih_t, w_hh_t, bias, w_out_t, b_out):
    """Pure-JAX reference (PyTorch gate order [i, f, g, o], no Pallas)."""
    T, _ = seq.shape
    H = w_hh_t.shape[0]
    h = jnp.zeros((1, H), jnp.float32)
    c = jnp.zeros((1, H), jnp.float32)
    outs = []
    for t in range(T):
        x_t = seq[t:t + 1, :]
        gates = x_t @ w_ih_t + h @ w_hh_t + bias
        i_g = jax.nn.sigmoid(gates[:, 0 * H:1 * H])
        f_g = jax.nn.sigmoid(gates[:, 1 * H:2 * H])
        g_g = jnp.tanh(gates[:, 2 * H:3 * H])
        o_g = jax.nn.sigmoid(gates[:, 3 * H:4 * H])
        c = f_g * c + i_g * g_g
        h = o_g * jnp.tanh(c)
        outs.append(h)
    lstm_out = jnp.concatenate(outs, axis=0)
    return lstm_out @ w_out_t + b_out


if __name__ == "__main__":
    # Small shapes consistent with the module's forward:
    #   sequence: (T, input_dim), batch = 1, hidden_dim = 32, bch_dim = 8
    T, INPUT_DIM, HIDDEN_DIM, BCH_DIM = 8, 16, 32, 8

    key = jax.random.PRNGKey(0)
    k = jax.random.split(key, 7)
    bound = 1.0 / (HIDDEN_DIM ** 0.5)  # PyTorch-style uniform init

    # LSTM params (stored transposed for right-multiply), gate order [i, f, g, o]
    w_ih_t = jax.random.uniform(k[0], (INPUT_DIM, 4 * HIDDEN_DIM),
                                jnp.float32, -bound, bound)
    w_hh_t = jax.random.uniform(k[1], (HIDDEN_DIM, 4 * HIDDEN_DIM),
                                jnp.float32, -bound, bound)
    b_ih = jax.random.uniform(k[2], (4 * HIDDEN_DIM,), jnp.float32, -bound, bound)
    b_hh = jax.random.uniform(k[3], (4 * HIDDEN_DIM,), jnp.float32, -bound, bound)
    bias = (b_ih + b_hh).reshape(1, 4 * HIDDEN_DIM)

    # hidden2bch Linear params
    w_out_t = jax.random.uniform(k[4], (HIDDEN_DIM, BCH_DIM),
                                 jnp.float32, -bound, bound)
    b_out = jax.random.uniform(k[5], (1, BCH_DIM), jnp.float32, -bound, bound)

    # Input sequence (T, input_dim); torch forward views it as (T, 1, input_dim).
    seq = jax.random.normal(k[6], (T, INPUT_DIM), jnp.float32)

    # One-time weight prep (outside the per-call hot path).
    (w_ih_p, w_hh_p, bias_p, w_out_p, b_out_p), bch_dim = \
        prepare_lstm_bch_weights(w_ih_t, w_hh_t, bias, w_out_t, b_out)

    bch_out = lstm_bch_forward(seq, w_ih_p, w_hh_p, bias_p, w_out_p, b_out_p,
                               bch_dim=bch_dim)
    jax.block_until_ready(bch_out)

    ref = _reference_lstm_bch(seq, w_ih_t, w_hh_t, bias, w_out_t, b_out)
    assert bch_out.shape == (T, BCH_DIM)
    assert jnp.allclose(bch_out, ref, atol=1e-5, rtol=1e-5), "mismatch vs reference"

    print("KERNEL_OK")
</pallas_src>

<mosaic_0001>
module attributes {stable_mosaic.version = 11 : i64} {
  func.func @_lstm_bch_kernel(%arg0: memref<8x16xf32, #tpu.memory_space<vmem>>, %arg1: memref<16x512xf32, #tpu.memory_space<vmem>>, %arg2: memref<32x512xf32, #tpu.memory_space<vmem>>, %arg3: memref<1x512xf32, #tpu.memory_space<vmem>>, %arg4: memref<32x128xf32, #tpu.memory_space<vmem>>, %arg5: memref<1x128xf32, #tpu.memory_space<vmem>>, %arg6: memref<8x128xf32, #tpu.memory_space<vmem>>, %arg7: memref<8x32xf32, #tpu.memory_space<vmem>>) attributes {dimension_semantics = [], scalar_prefetch = 0 : i64, scratch_operands = 1 : i64, tpu.core_type = #tpu.core_type<tc>} {
    %c0 = arith.constant 0 : index
    %c0_0 = arith.constant 0 : index
    %0 = vector.load %arg0[%c0, %c0_0] : memref<8x16xf32, #tpu.memory_space<vmem>>, vector<8x16xf32>
    %c0_1 = arith.constant 0 : index
    %c0_2 = arith.constant 0 : index
    %1 = vector.load %arg1[%c0_1, %c0_2] : memref<16x512xf32, #tpu.memory_space<vmem>>, vector<16x512xf32>
    %cst = arith.constant dense<0.000000e+00> : vector<8x512xf32>
    %2 = tpu.matmul %0, %1, %cst {dimension_numbers = #tpu.dot_dimension_numbers<[1], [0], [0], [1], [0, 0, 1, 1], [], []>} : vector<8x16xf32>, vector<16x512xf32>, vector<8x512xf32> -> vector<8x512xf32>
    %c0_3 = arith.constant 0 : index
    %c0_4 = arith.constant 0 : index
    %3 = vector.load %arg3[%c0_3, %c0_4] : memref<1x512xf32, #tpu.memory_space<vmem>>, vector<1x512xf32>
    %4 = vector.broadcast %3 : vector<1x512xf32> to vector<8x512xf32>
    %5 = arith.addf %2, %4 : vector<8x512xf32>
    %c0_5 = arith.constant 0 : index
    %c0_6 = arith.constant 0 : index
    %6 = vector.load %arg2[%c0_5, %c0_6] : memref<32x512xf32, #tpu.memory_space<vmem>>, vector<32x512xf32>
    %cst_7 = arith.constant 0.000000e+00 : f32
    %7 = vector.broadcast %cst_7 : f32 to vector<1x32xf32>
    %cst_8 = arith.constant 0.000000e+00 : f32
    %8 = vector.broadcast %cst_8 : f32 to vector<1x32xf32>
    %9 = vector.extract_strided_slice %5 {offsets = [0, 0], sizes = [1, 512], strides = [1, 1]} : vector<8x512xf32> to vector<1x512xf32>
    %cst_9 = arith.constant dense<0.000000e+00> : vector<1x512xf32>
    %10 = tpu.matmul %7, %6, %cst_9 {dimension_numbers = #tpu.dot_dimension_numbers<[1], [0], [0], [1], [0, 0, 1, 1], [], []>} : vector<1x32xf32>, vector<32x512xf32>, vector<1x512xf32> -> vector<1x512xf32>
    %11 = arith.addf %9, %10 : vector<1x512xf32>
    %12 = vector.extract_strided_slice %11 {offsets = [0, 0], sizes = [1, 32], strides = [1, 1]} : vector<1x512xf32> to vector<1x32xf32>
    %13 = arith.negf %12 : vector<1x32xf32>
    %14 = math.exp %13 : vector<1x32xf32>
    %cst_10 = arith.constant 1.000000e+00 : f32
    %15 = vector.broadcast %cst_10 : f32 to vector<1x32xf32>
    %16 = arith.addf %15, %14 : vector<1x32xf32>
    %17 = arith.divf %15, %16 : vector<1x32xf32>
    %18 = vector.extract_strided_slice %11 {offsets = [0, 128], sizes = [1, 32], strides = [1, 1]} : vector<1x512xf32> to vector<1x32xf32>
    %19 = arith.negf %18 : vector<1x32xf32>
    %20 = math.exp %19 : vector<1x32xf32>
    %cst_11 = arith.constant 1.000000e+00 : f32
    %21 = vector.broadcast %cst_11 : f32 to vector<1x32xf32>
    %22 = arith.addf %21, %20 : vector<1x32xf32>
    %23 = arith.divf %21, %22 : vector<1x32xf32>
    %24 = vector.extract_strided_slice %11 {offsets = [0, 256], sizes = [1, 32], strides = [1, 1]} : vector<1x512xf32> to vector<1x32xf32>
    %25 = math.tanh %24 : vector<1x32xf32>
    %26 = vector.extract_strided_slice %11 {offsets = [0, 384], sizes = [1, 32], strides = [1, 1]} : vector<1x512xf32> to vector<1x32xf32>
    %27 = arith.negf %26 : vector<1x32xf32>
    %28 = math.exp %27 : vector<1x32xf32>
    %cst_12 = arith.constant 1.000000e+00 : f32
    %29 = vector.broadcast %cst_12 : f32 to vector<1x32xf32>
    %30 = arith.addf %29, %28 : vector<1x32xf32>
    %31 = arith.divf %29, %30 : vector<1x32xf32>
    %32 = arith.mulf %23, %8 : vector<1x32xf32>
    %33 = arith.mulf %17, %25 : vector<1x32xf32>
    %34 = arith.addf %32, %33 : vector<1x32xf32>
    %35 = math.tanh %34 : vector<1x32xf32>
    %36 = arith.mulf %31, %35 : vector<1x32xf32>
    %c0_13 = arith.constant 0 : index
    %c0_14 = arith.constant 0 : index
    %37 = vector.load %arg7[%c0_13, %c0_14] : memref<8x32xf32, #tpu.memory_space<vmem>>, vector<1x32xf32>
    tpu.vector_store %arg7[%c0_13, %c0_14], %36 {strides = array<i32>} : memref<8x32xf32, #tpu.memory_space<vmem>>, vector<1x32xf32>,
    %38 = vector.extract_strided_slice %5 {offsets = [1, 0], sizes = [1, 512], strides = [1, 1]} : vector<8x512xf32> to vector<1x512xf32>
    %cst_15 = arith.constant dense<0.000000e+00> : vector<1x512xf32>
    %39 = tpu.matmul %36, %6, %cst_15 {dimension_numbers = #tpu.dot_dimension_numbers<[1], [0], [0], [1], [0, 0, 1, 1], [], []>} : vector<1x32xf32>, vector<32x512xf32>, vector<1x512xf32> -> vector<1x512xf32>
    %40 = arith.addf %38, %39 : vector<1x512xf32>
    %41 = vector.extract_strided_slice %40 {offsets = [0, 0], sizes = [1, 32], strides = [1, 1]} : vector<1x512xf32> to vector<1x32xf32>
    %42 = arith.negf %41 : vector<1x32xf32>
    %43 = math.exp %42 : vector<1x32xf32>
    %cst_16 = arith.constant 1.000000e+00 : f32
    %44 = vector.broadcast %cst_16 : f32 to vector<1x32xf32>
    %45 = arith.addf %44, %43 : vector<1x32xf32>
    %46 = arith.divf %44, %45 : vector<1x32xf32>
    %47 = vector.extract_strided_slice %40 {offsets = [0, 128], sizes = [1, 32], strides = [1, 1]} : vector<1x512xf32> to vector<1x32xf32>
    %48 = arith.negf %47 : vector<1x32xf32>
    %49 = math.exp %48 : vector<1x32xf32>
    %cst_17 = arith.constant 1.000000e+00 : f32
    %50 = vector.broadcast %cst_17 : f32 to vector<1x32xf32>
    %51 = arith.addf %50, %49 : vector<1x32xf32>
    %52 = arith.divf %50, %51 : vector<1x32xf32>
    %53 = vector.extract_strided_slice %40 {offsets = [0, 256], sizes = [1, 32], strides = [1, 1]} : vector<1x512xf32> to vector<1x32xf32>
    %54 = math.tanh %53 : vector<1x32xf32>
    %55 = vector.extract_strided_slice %40 {offsets = [0, 384], sizes = [1, 32], strides = [1, 1]} : vector<1x512xf32> to vector<1x32xf32>
    %56 = arith.negf %55 : vector<1x32xf32>
    %57 = math.exp %56 : vector<1x32xf32>
    %cst_18 = arith.constant 1.000000e+00 : f32
    %58 = vector.broadcast %cst_18 : f32 to vector<1x32xf32>
    %59 = arith.addf %58, %57 : vector<1x32xf32>
    %60 = arith.divf %58, %59 : vector<1x32xf32>
    %61 = arith.mulf %52, %34 : vector<1x32xf32>
    %62 = arith.mulf %46, %54 : vector<1x32xf32>
    %63 = arith.addf %61, %62 : vector<1x32xf32>
    %64 = math.tanh %63 : vector<1x32xf32>
    %65 = arith.mulf %60, %64 : vector<1x32xf32>
    %c1 = arith.constant 1 : index
    %c0_19 = arith.constant 0 : index
    %66 = vector.load %arg7[%c1, %c0_19] : memref<8x32xf32, #tpu.memory_space<vmem>>, vector<1x32xf32>
    tpu.vector_store %arg7[%c1, %c0_19], %65 {strides = array<i32>} : memref<8x32xf32, #tpu.memory_space<vmem>>, vector<1x32xf32>,
    %67 = vector.extract_strided_slice %5 {offsets = [2, 0], sizes = [1, 512], strides = [1, 1]} : vector<8x512xf32> to vector<1x512xf32>
    %cst_20 = arith.constant dense<0.000000e+00> : vector<1x512xf32>
    %68 = tpu.matmul %65, %6, %cst_20 {dimension_numbers = #tpu.dot_dimension_numbers<[1], [0], [0], [1], [0, 0, 1, 1], [], []>} : vector<1x32xf32>, vector<32x512xf32>, vector<1x512xf32> -> vector<1x512xf32>
    %69 = arith.addf %67, %68 : vector<1x512xf32>
    %70 = vector.extract_strided_slice %69 {offsets = [0, 0], sizes = [1, 32], strides = [1, 1]} : vector<1x512xf32> to vector<1x32xf32>
    %71 = arith.negf %70 : vector<1x32xf32>
    %72 = math.exp %71 : vector<1x32xf32>
    %cst_21 = arith.constant 1.000000e+00 : f32
    %73 = vector.broadcast %cst_21 : f32 to vector<1x32xf32>
    %74 = arith.addf %73, %72 : vector<1x32xf32>
    %75 = arith.divf %73, %74 : vector<1x32xf32>
    %76 = vector.extract_strided_slice %69 {offsets = [0, 128], sizes = [1, 32], strides = [1, 1]} : vector<1x512xf32> to vector<1x32xf32>
    %77 = arith.negf %76 : vector<1x32xf32>
    %78 = math.exp %77 : vector<1x32xf32>
    %cst_22 = arith.constant 1.000000e+00 : f32
    %79 = vector.broadcast %cst_22 : f32 to vector<1x32xf32>
    %80 = arith.addf %79, %78 : vector<1x32xf32>
    %81 = arith.divf %79, %80 : vector<1x32xf32>
    %82 = vector.extract_strided_slice %69 {offsets = [0, 256], sizes = [1, 32], strides = [1, 1]} : vector<1x512xf32> to vector<1x32xf32>
    %83 = math.tanh %82 : vector<1x32xf32>
    %84 = vector.extract_strided_slice %69 {offsets = [0, 384], sizes = [1, 32], strides = [1, 1]} : vector<1x512xf32> to vector<1x32xf32>
    %85 = arith.negf %84 : vector<1x32xf32>
    %86 = math.exp %85 : vector<1x32xf32>
    %cst_23 = arith.constant 1.000000e+00 : f32
    %87 = vector.broadcast %cst_23 : f32 to vector<1x32xf32>
    %88 = arith.addf %87, %86 : vector<1x32xf32>
    %89 = arith.divf %87, %88 : vector<1x32xf32>
    %90 = arith.mulf %81, %63 : vector<1x32xf32>
    %91 = arith.mulf %75, %83 : vector<1x32xf32>
    %92 = arith.addf %90, %91 : vector<1x32xf32>
    %93 = math.tanh %92 : vector<1x32xf32>
    %94 = arith.mulf %89, %93 : vector<1x32xf32>
    %c2 = arith.constant 2 : index
    %c0_24 = arith.constant 0 : index
    %95 = vector.load %arg7[%c2, %c0_24] : memref<8x32xf32, #tpu.memory_space<vmem>>, vector<1x32xf32>
    tpu.vector_store %arg7[%c2, %c0_24], %94 {strides = array<i32>} : memref<8x32xf32, #tpu.memory_space<vmem>>, vector<1x32xf32>,
    %96 = vector.extract_strided_slice %5 {offsets = [3, 0], sizes = [1, 512], strides = [1, 1]} : vector<8x512xf32> to vector<1x512xf32>
    %cst_25 = arith.constant dense<0.000000e+00> : vector<1x512xf32>
    %97 = tpu.matmul %94, %6, %cst_25 {dimension_numbers = #tpu.dot_dimension_numbers<[1], [0], [0], [1], [0, 0, 1, 1], [], []>} : vector<1x32xf32>, vector<32x512xf32>, vector<1x512xf32> -> vector<1x512xf32>
    %98 = arith.addf %96, %97 : vector<1x512xf32>
    %99 = vector.extract_strided_slice %98 {offsets = [0, 0], sizes = [1, 32], strides = [1, 1]} : vector<1x512xf32> to vector<1x32xf32>
    %100 = arith.negf %99 : vector<1x32xf32>
    %101 = math.exp %100 : vector<1x32xf32>
    %cst_26 = arith.constant 1.000000e+00 : f32
    %102 = vector.broadcast %cst_26 : f32 to vector<1x32xf32>
    %103 = arith.addf %102, %101 : vector<1x32xf32>
    %104 = arith.divf %102, %103 : vector<1x32xf32>
    %105 = vector.extract_strided_slice %98 {offsets = [0, 128], sizes = [1, 32], strides = [1, 1]} : vector<1x512xf32> to vector<1x32xf32>
    %106 = arith.negf %105 : vector<1x32xf32>
    %107 = math.exp %106 : vector<1x32xf32>
    %cst_27 = arith.constant 1.000000e+00 : f32
    %108 = vector.broadcast %cst_27 : f32 to vector<1x32xf32>
    %109 = arith.addf %108, %107 : vector<1x32xf32>
    %110 = arith.divf %108, %109 : vector<1x32xf32>
    %111 = vector.extract_strided_slice %98 {offsets = [0, 256], sizes = [1, 32], strides = [1, 1]} : vector<1x512xf32> to vector<1x32xf32>
    %112 = math.tanh %111 : vector<1x32xf32>
    %113 = vector.extract_strided_slice %98 {offsets = [0, 384], sizes = [1, 32], strides = [1, 1]} : vector<1x512xf32> to vector<1x32xf32>
    %114 = arith.negf %113 : vector<1x32xf32>
    %115 = math.exp %114 : vector<1x32xf32>
    %cst_28 = arith.constant 1.000000e+00 : f32
    %116 = vector.broadcast %cst_28 : f32 to vector<1x32xf32>
    %117 = arith.addf %116, %115 : vector<1x32xf32>
    %118 = arith.divf %116, %117 : vector<1x32xf32>
    %119 = arith.mulf %110, %92 : vector<1x32xf32>
    %120 = arith.mulf %104, %112 : vector<1x32xf32>
    %121 = arith.addf %119, %120 : vector<1x32xf32>
    %122 = math.tanh %121 : vector<1x32xf32>
    %123 = arith.mulf %118, %122 : vector<1x32xf32>
    %c3 = arith.constant 3 : index
    %c0_29 = arith.constant 0 : index
    %124 = vector.load %arg7[%c3, %c0_29] : memref<8x32xf32, #tpu.memory_space<vmem>>, vector<1x32xf32>
    tpu.vector_store %arg7[%c3, %c0_29], %123 {strides = array<i32>} : memref<8x32xf32, #tpu.memory_space<vmem>>, vector<1x32xf32>,
    %125 = vector.extract_strided_slice %5 {offsets = [4, 0], sizes = [1, 512], strides = [1, 1]} : vector<8x512xf32> to vector<1x512xf32>
    %cst_30 = arith.constant dense<0.000000e+00> : vector<1x512xf32>
    %126 = tpu.matmul %123, %6, %cst_30 {dimension_numbers = #tpu.dot_dimension_numbers<[1], [0], [0], [1], [0, 0, 1, 1], [], []>} : vector<1x32xf32>, vector<32x512xf32>, vector<1x512xf32> -> vector<1x512xf32>
    %127 = arith.addf %125, %126 : vector<1x512xf32>
    %128 = vector.extract_strided_slice %127 {offsets = [0, 0], sizes = [1, 32], strides = [1, 1]} : vector<1x512xf32> to vector<1x32xf32>
    %129 = arith.negf %128 : vector<1x32xf32>
    %130 = math.exp %129 : vector<1x32xf32>
    %cst_31 = arith.constant 1.000000e+00 : f32
    %131 = vector.broadcast %cst_31 : f32 to vector<1x32xf32>
    %132 = arith.addf %131, %130 : vector<1x32xf32>
    %133 = arith.divf %131, %132 : vector<1x32xf32>
    %134 = vector.extract_strided_slice %127 {offsets = [0, 128], sizes = [1, 32], strides = [1, 1]} : vector<1x512xf32> to vector<1x32xf32>
    %135 = arith.negf %134 : vector<1x32xf32>
    %136 = math.exp %135 : vector<1x32xf32>
    %cst_32 = arith.constant 1.000000e+00 : f32
    %137 = vector.broadcast %cst_32 : f32 to vector<1x32xf32>
    %138 = arith.addf %137, %136 : vector<1x32xf32>
    %139 = arith.divf %137, %138 : vector<1x32xf32>
    %140 = vector.extract_strided_slice %127 {offsets = [0, 256], sizes = [1, 32], strides = [1, 1]} : vector<1x512xf32> to vector<1x32xf32>
    %141 = math.tanh %140 : vector<1x32xf32>
    %142 = vector.extract_strided_slice %127 {offsets = [0, 384], sizes = [1, 32], strides = [1, 1]} : vector<1x512xf32> to vector<1x32xf32>
    %143 = arith.negf %142 : vector<1x32xf32>
    %144 = math.exp %143 : vector<1x32xf32>
    %cst_33 = arith.constant 1.000000e+00 : f32
    %145 = vector.broadcast %cst_33 : f32 to vector<1x32xf32>
    %146 = arith.addf %145, %144 : vector<1x32xf32>
    %147 = arith.divf %145, %146 : vector<1x32xf32>
    %148 = arith.mulf %139, %121 : vector<1x32xf32>
    %149 = arith.mulf %133, %141 : vector<1x32xf32>
    %150 = arith.addf %148, %149 : vector<1x32xf32>
    %151 = math.tanh %150 : vector<1x32xf32>
    %152 = arith.mulf %147, %151 : vector<1x32xf32>
    %c4 = arith.constant 4 : index
    %c0_34 = arith.constant 0 : index
    %153 = vector.load %arg7[%c4, %c0_34] : memref<8x32xf32, #tpu.memory_space<vmem>>, vector<1x32xf32>
    tpu.vector_store %arg7[%c4, %c0_34], %152 {strides = array<i32>} : memref<8x32xf32, #tpu.memory_space<vmem>>, vector<1x32xf32>,
    %154 = vector.extract_strided_slice %5 {offsets = [5, 0], sizes = [1, 512], strides = [1, 1]} : vector<8x512xf32> to vector<1x512xf32>
    %cst_35 = arith.constant dense<0.000000e+00> : vector<1x512xf32>
    %155 = tpu.matmul %152, %6, %cst_35 {dimension_numbers = #tpu.dot_dimension_numbers<[1], [0], [0], [1], [0, 0, 1, 1], [], []>} : vector<1x32xf32>, vector<32x512xf32>, vector<1x512xf32> -> vector<1x512xf32>
    %156 = arith.addf %154, %155 : vector<1x512xf32>
    %157 = vector.extract_strided_slice %156 {offsets = [0, 0], sizes = [1, 32], strides = [1, 1]} : vector<1x512xf32> to vector<1x32xf32>
    %158 = arith.negf %157 : vector<1x32xf32>
    %159 = math.exp %158 : vector<1x32xf32>
    %cst_36 = arith.constant 1.000000e+00 : f32
    %160 = vector.broadcast %cst_36 : f32 to vector<1x32xf32>
    %161 = arith.addf %160, %159 : vector<1x32xf32>
    %162 = arith.divf %160, %161 : vector<1x32xf32>
    %163 = vector.extract_strided_slice %156 {offsets = [0, 128], sizes = [1, 32], strides = [1, 1]} : vector<1x512xf32> to vector<1x32xf32>
    %164 = arith.negf %163 : vector<1x32xf32>
    %165 = math.exp %164 : vector<1x32xf32>
    %cst_37 = arith.constant 1.000000e+00 : f32
    %166 = vector.broadcast %cst_37 : f32 to vector<1x32xf32>
    %167 = arith.addf %166, %165 : vector<1x32xf32>
    %168 = arith.divf %166, %167 : vector<1x32xf32>
    %169 = vector.extract_strided_slice %156 {offsets = [0, 256], sizes = [1, 32], strides = [1, 1]} : vector<1x512xf32> to vector<1x32xf32>
    %170 = math.tanh %169 : vector<1x32xf32>
    %171 = vector.extract_strided_slice %156 {offsets = [0, 384], sizes = [1, 32], strides = [1, 1]} : vector<1x512xf32> to vector<1x32xf32>
    %172 = arith.negf %171 : vector<1x32xf32>
    %173 = math.exp %172 : vector<1x32xf32>
    %cst_38 = arith.constant 1.000000e+00 : f32
    %174 = vector.broadcast %cst_38 : f32 to vector<1x32xf32>
    %175 = arith.addf %174, %173 : vector<1x32xf32>
    %176 = arith.divf %174, %175 : vector<1x32xf32>
    %177 = arith.mulf %168, %150 : vector<1x32xf32>
    %178 = arith.mulf %162, %170 : vector<1x32xf32>
    %179 = arith.addf %177, %178 : vector<1x32xf32>
    %180 = math.tanh %179 : vector<1x32xf32>
    %181 = arith.mulf %176, %180 : vector<1x32xf32>
    %c5 = arith.constant 5 : index
    %c0_39 = arith.constant 0 : index
    %182 = vector.load %arg7[%c5, %c0_39] : memref<8x32xf32, #tpu.memory_space<vmem>>, vector<1x32xf32>
    tpu.vector_store %arg7[%c5, %c0_39], %181 {strides = array<i32>} : memref<8x32xf32, #tpu.memory_space<vmem>>, vector<1x32xf32>,
    %183 = vector.extract_strided_slice %5 {offsets = [6, 0], sizes = [1, 512], strides = [1, 1]} : vector<8x512xf32> to vector<1x512xf32>
    %cst_40 = arith.constant dense<0.000000e+00> : vector<1x512xf32>
    %184 = tpu.matmul %181, %6, %cst_40 {dimension_numbers = #tpu.dot_dimension_numbers<[1], [0], [0], [1], [0, 0, 1, 1], [], []>} : vector<1x32xf32>, vector<32x512xf32>, vector<1x512xf32> -> vector<1x512xf32>
    %185 = arith.addf %183, %184 : vector<1x512xf32>
    %186 = vector.extract_strided_slice %185 {offsets = [0, 0], sizes = [1, 32], strides = [1, 1]} : vector<1x512xf32> to vector<1x32xf32>
    %187 = arith.negf %186 : vector<1x32xf32>
    %188 = math.exp %187 : vector<1x32xf32>
    %cst_41 = arith.constant 1.000000e+00 : f32
    %189 = vector.broadcast %cst_41 : f32 to vector<1x32xf32>
    %190 = arith.addf %189, %188 : vector<1x32xf32>
    %191 = arith.divf %189, %190 : vector<1x32xf32>
    %192 = vector.extract_strided_slice %185 {offsets = [0, 128], sizes = [1, 32], strides = [1, 1]} : vector<1x512xf32> to vector<1x32xf32>
    %193 = arith.negf %192 : vector<1x32xf32>
    %194 = math.exp %193 : vector<1x32xf32>
    %cst_42 = arith.constant 1.000000e+00 : f32
    %195 = vector.broadcast %cst_42 : f32 to vector<1x32xf32>
    %196 = arith.addf %195, %194 : vector<1x32xf32>
    %197 = arith.divf %195, %196 : vector<1x32xf32>
    %198 = vector.extract_strided_slice %185 {offsets = [0, 256], sizes = [1, 32], strides = [1, 1]} : vector<1x512xf32> to vector<1x32xf32>
    %199 = math.tanh %198 : vector<1x32xf32>
    %200 = vector.extract_strided_slice %185 {offsets = [0, 384], sizes = [1, 32], strides = [1, 1]} : vector<1x512xf32> to vector<1x32xf32>
    %201 = arith.negf %200 : vector<1x32xf32>
    %202 = math.exp %201 : vector<1x32xf32>
    %cst_43 = arith.constant 1.000000e+00 : f32
    %203 = vector.broadcast %cst_43 : f32 to vector<1x32xf32>
    %204 = arith.addf %203, %202 : vector<1x32xf32>
    %205 = arith.divf %203, %204 : vector<1x32xf32>
    %206 = arith.mulf %197, %179 : vector<1x32xf32>
    %207 = arith.mulf %191, %199 : vector<1x32xf32>
    %208 = arith.addf %206, %207 : vector<1x32xf32>
    %209 = math.tanh %208 : vector<1x32xf32>
    %210 = arith.mulf %205, %209 : vector<1x32xf32>
    %c6 = arith.constant 6 : index
    %c0_44 = arith.constant 0 : index
    %211 = vector.load %arg7[%c6, %c0_44] : memref<8x32xf32, #tpu.memory_space<vmem>>, vector<1x32xf32>
    tpu.vector_store %arg7[%c6, %c0_44], %210 {strides = array<i32>} : memref<8x32xf32, #tpu.memory_space<vmem>>, vector<1x32xf32>,
    %212 = vector.extract_strided_slice %5 {offsets = [7, 0], sizes = [1, 512], strides = [1, 1]} : vector<8x512xf32> to vector<1x512xf32>
    %cst_45 = arith.constant dense<0.000000e+00> : vector<1x512xf32>
    %213 = tpu.matmul %210, %6, %cst_45 {dimension_numbers = #tpu.dot_dimension_numbers<[1], [0], [0], [1], [0, 0, 1, 1], [], []>} : vector<1x32xf32>, vector<32x512xf32>, vector<1x512xf32> -> vector<1x512xf32>
    %214 = arith.addf %212, %213 : vector<1x512xf32>
    %215 = vector.extract_strided_slice %214 {offsets = [0, 0], sizes = [1, 32], strides = [1, 1]} : vector<1x512xf32> to vector<1x32xf32>
    %216 = arith.negf %215 : vector<1x32xf32>
    %217 = math.exp %216 : vector<1x32xf32>
    %cst_46 = arith.constant 1.000000e+00 : f32
    %218 = vector.broadcast %cst_46 : f32 to vector<1x32xf32>
    %219 = arith.addf %218, %217 : vector<1x32xf32>
    %220 = arith.divf %218, %219 : vector<1x32xf32>
    %221 = vector.extract_strided_slice %214 {offsets = [0, 128], sizes = [1, 32], strides = [1, 1]} : vector<1x512xf32> to vector<1x32xf32>
    %222 = arith.negf %221 : vector<1x32xf32>
    %223 = math.exp %222 : vector<1x32xf32>
    %cst_47 = arith.constant 1.000000e+00 : f32
    %224 = vector.broadcast %cst_47 : f32 to vector<1x32xf32>
    %225 = arith.addf %224, %223 : vector<1x32xf32>
    %226 = arith.divf %224, %225 : vector<1x32xf32>
    %227 = vector.extract_strided_slice %214 {offsets = [0, 256], sizes = [1, 32], strides = [1, 1]} : vector<1x512xf32> to vector<1x32xf32>
    %228 = math.tanh %227 : vector<1x32xf32>
    %229 = vector.extract_strided_slice %214 {offsets = [0, 384], sizes = [1, 32], strides = [1, 1]} : vector<1x512xf32> to vector<1x32xf32>
    %230 = arith.negf %229 : vector<1x32xf32>
    %231 = math.exp %230 : vector<1x32xf32>
    %cst_48 = arith.constant 1.000000e+00 : f32
    %232 = vector.broadcast %cst_48 : f32 to vector<1x32xf32>
    %233 = arith.addf %232, %231 : vector<1x32xf32>
    %234 = arith.divf %232, %233 : vector<1x32xf32>
    %235 = arith.mulf %226, %208 : vector<1x32xf32>
    %236 = arith.mulf %220, %228 : vector<1x32xf32>
    %237 = arith.addf %235, %236 : vector<1x32xf32>
    %238 = math.tanh %237 : vector<1x32xf32>
    %239 = arith.mulf %234, %238 : vector<1x32xf32>
    %c7 = arith.constant 7 : index
    %c0_49 = arith.constant 0 : index
    %240 = vector.load %arg7[%c7, %c0_49] : memref<8x32xf32, #tpu.memory_space<vmem>>, vector<1x32xf32>
    tpu.vector_store %arg7[%c7, %c0_49], %239 {strides = array<i32>} : memref<8x32xf32, #tpu.memory_space<vmem>>, vector<1x32xf32>,
    %c0_50 = arith.constant 0 : index
    %c0_51 = arith.constant 0 : index
    %241 = vector.load %arg7[%c0_50, %c0_51] : memref<8x32xf32, #tpu.memory_space<vmem>>, vector<8x32xf32>
    %c0_52 = arith.constant 0 : index
    %c0_53 = arith.constant 0 : index
    %242 = vector.load %arg4[%c0_52, %c0_53] : memref<32x128xf32, #tpu.memory_space<vmem>>, vector<32x128xf32>
    %cst_54 = arith.constant dense<0.000000e+00> : vector<8x128xf32>
    %243 = tpu.matmul %241, %242, %cst_54 {dimension_numbers = #tpu.dot_dimension_numbers<[1], [0], [0], [1], [0, 0, 1, 1], [], []>} : vector<8x32xf32>, vector<32x128xf32>, vector<8x128xf32> -> vector<8x128xf32>
    %c0_55 = arith.constant 0 : index
    %c0_56 = arith.constant 0 : index
    %244 = vector.load %arg5[%c0_55, %c0_56] : memref<1x128xf32, #tpu.memory_space<vmem>>, vector<1x128xf32>
    %245 = vector.broadcast %244 : vector<1x128xf32> to vector<8x128xf32>
    %246 = arith.addf %243, %245 : vector<8x128xf32>
    %c0_57 = arith.constant 0 : index
    %c0_58 = arith.constant 0 : index
    %247 = vector.load %arg6[%c0_57, %c0_58] : memref<8x128xf32, #tpu.memory_space<vmem>>, vector<8x128xf32>
    tpu.vector_store %arg6[%c0_57, %c0_58], %246 {strides = array<i32>} : memref<8x128xf32, #tpu.memory_space<vmem>>, vector<8x128xf32>,
    return
  }
}

</mosaic_0001>

<llo_original>
// kernel: lstm_bch_forward.1
$region0: #{lstm_bch_forward.1}
  #allocation0 [shape = 'u32[]', space=smem, size = 0x4, offset = 0x4, fixed_abs, tag = 'smem constant byte address 0x4 - core index']
  #allocation1 [shape = 'u32[144,128]{1,0:T(1,128)}', space=vmem, size = 0x12000, scoped, tag = 'internal scratch']
  #allocation2 [shape = 'f32[8,32]{1,0:T(8,128)}', space=vmem, size = 0x1000, scoped, tag = 'scratch operand']
  %s0 = inlined_call_operand.hbm [shape: f32[8,16], index: 0, kind: input, shape index: {}]
  %s1 = inlined_call_operand.hbm [shape: f32[16,512], index: 1, kind: input, shape index: {}]
  %s2 = inlined_call_operand.hbm [shape: f32[32,512], index: 2, kind: input, shape index: {}]
  %s3 = inlined_call_operand.vmem [shape: f32[1,512], index: 3, kind: input, shape index: {}]
  %s4 = inlined_call_operand.hbm [shape: f32[32,128], index: 4, kind: input, shape index: {}]
  %s5 = inlined_call_operand.vmem [shape: f32[1,128], index: 5, kind: input, shape index: {}]
  %s6 = inlined_call_operand.hbm [shape: f32[8,128], index: 6, kind: output, shape index: {}]
  %s7 = sld [smem:[#allocation0]]
  $region50: #{lstm_bch_forward.1} parent=0
    _
  %s9 = ssub.s32 1, %s7
  %s10 = scalar_select 0, %s9, %s7
  $region1: #{lstm_bch_forward.1} parent=0
    #allocation3 [shape = 'u8[4096]{0}', space=vmem, size = 0x1000, scoped, tag = 'input window, operand 0, single buffered']
    #allocation4 [shape = 's32[1]{0}', space=sflag, size = 0x4, scoped, tag = 'scoped memory for lstm_bch_forward.1']
    #allocation5 [shape = 's32[1]{0}', space=sflag, size = 0x4, scoped, tag = 'scoped memory for lstm_bch_forward.1']
    #allocation6 [shape = 'u8[32768]{0}', space=vmem, size = 0x8000, scoped, tag = 'input window, operand 1, single buffered']
    #allocation7 [shape = 's32[1]{0}', space=sflag, size = 0x4, scoped, tag = 'scoped memory for lstm_bch_forward.1']
    #allocation8 [shape = 'u8[65536]{0}', space=vmem, size = 0x10000, scoped, tag = 'input window, operand 2, single buffered']
    #allocation9 [shape = 'u8[16384]{0}', space=vmem, size = 0x4000, scoped, tag = 'input window, operand 4, single buffered']
    #allocation10 [shape = 's32[1]{0}', space=sflag, size = 0x4, scoped, tag = 'scoped memory for lstm_bch_forward.1']
    #allocation11 [shape = 'u8[4096]{0}', space=vmem, size = 0x1000, scoped, tag = 'output window, operand 0, single buffered']
    %11 = vsyncpa [#allocation4], 0
    %12 = vsyncpa [#allocation7], 0
    %13 = vsyncpa [#allocation10], 0
    %14 = vsyncpa [#allocation5], 0
    // Predicated region
    $region2: #{lstm_bch_forward.1} parent=1 // pred_check
      _
    $region3: #{lstm_bch_forward.1} parent=1 // pred_check_branch
      %16 = sbr.rel (0) target = $region5
    $region4: #{lstm_bch_forward.1} parent=1 // pred_region
      %s18 = ssub.s32 128, 128
      %19 = vsyncadd [#allocation4], %s18
      %s21 = sshll.u32 [#allocation3], 4
      %s22 = int_to_ptr.vmem [resolvable:$true] %s21
      %24 = dma.hbm_to_vmem [thread:$0]  %s0, 128, %s22, [#allocation4]
    $region5: #{lstm_bch_forward.1} parent=1 // pred_fallthru
      _
    // Predicated region
    $region6: #{lstm_bch_forward.1} parent=1 // pred_check
      _
    $region7: #{lstm_bch_forward.1} parent=1 // pred_check_branch
      %26 = sbr.rel (0) target = $region9
    $region8: #{lstm_bch_forward.1} parent=1 // pred_region
      %s28 = ssub.s32 1024, 1024
      %29 = vsyncadd [#allocation7], %s28
      %s30 = sshll.u32 [#allocation6], 4
      %s31 = int_to_ptr.vmem [resolvable:$true] %s30
      %36 = dma.hbm_to_vmem [thread:$0]  %s1, 1024, %s31, [#allocation7], 512, 512, 32
    $region9: #{lstm_bch_forward.1} parent=1 // pred_fallthru
      _
    // Predicated region
    $region10: #{lstm_bch_forward.1} parent=1 // pred_check
      _
    $region11: #{lstm_bch_forward.1} parent=1 // pred_check_branch
      %38 = sbr.rel (0) target = $region13
    $region12: #{lstm_bch_forward.1} parent=1 // pred_region
      %s40 = ssub.s32 2048, 2048
      %41 = vsyncadd [#allocation7], %s40
      %s42 = sshll.u32 [#allocation8], 4
      %s43 = int_to_ptr.vmem [resolvable:$true] %s42
      %48 = dma.hbm_to_vmem [thread:$0]  %s2, 2048, %s43, [#allocation7], 512, 512, 32
    $region13: #{lstm_bch_forward.1} parent=1 // pred_fallthru
      _
    // Predicated region
    $region14: #{lstm_bch_forward.1} parent=1 // pred_check
      _
    $region15: #{lstm_bch_forward.1} parent=1 // pred_check_branch
      %50 = sbr.rel (0) target = $region17
    $region16: #{lstm_bch_forward.1} parent=1 // pred_region
      _
    $region17: #{lstm_bch_forward.1} parent=1 // pred_fallthru
      _
    // Predicated region
    $region18: #{lstm_bch_forward.1} parent=1 // pred_check
      _
    $region19: #{lstm_bch_forward.1} parent=1 // pred_check_branch
      %52 = sbr.rel (0) target = $region21
    $region20: #{lstm_bch_forward.1} parent=1 // pred_region
      %s54 = ssub.s32 512, 512
      %55 = vsyncadd [#allocation10], %s54
      %s56 = sshll.u32 [#allocation9], 4
      %s57 = int_to_ptr.vmem [resolvable:$true] %s56
      %62 = dma.hbm_to_vmem [thread:$0]  %s4, 512, %s57, [#allocation10], 128, 128, 8
    $region21: #{lstm_bch_forward.1} parent=1 // pred_fallthru
      _
    // Predicated region
    $region22: #{lstm_bch_forward.1} parent=1 // pred_check
      _
    $region23: #{lstm_bch_forward.1} parent=1 // pred_check_branch
      %64 = sbr.rel (0) target = $region25
    $region24: #{lstm_bch_forward.1} parent=1 // pred_region
      _
    $region25: #{lstm_bch_forward.1} parent=1 // pred_fallthru
      _
    // Predicated region
    $region26: #{lstm_bch_forward.1} parent=1 // pred_check
      _
    $region27: #{lstm_bch_forward.1} parent=1 // pred_check_branch
      %66 = sbr.rel (0) target = $region29
    $region28: #{lstm_bch_forward.1} parent=1 // pred_region
      %67 = dma.done [#allocation4], 128
    $region29: #{lstm_bch_forward.1} parent=1 // pred_fallthru
      _
    // Predicated region
    $region30: #{lstm_bch_forward.1} parent=1 // pred_check
      _
    $region31: #{lstm_bch_forward.1} parent=1 // pred_check_branch
      %69 = sbr.rel (0) target = $region33
    $region32: #{lstm_bch_forward.1} parent=1 // pred_region
      %70 = dma.done [#allocation7], 1024
    $region33: #{lstm_bch_forward.1} parent=1 // pred_fallthru
      _
    // Predicated region
    $region34: #{lstm_bch_forward.1} parent=1 // pred_check
      _
    $region35: #{lstm_bch_forward.1} parent=1 // pred_check_branch
      %72 = sbr.rel (0) target = $region37
    $region36: #{lstm_bch_forward.1} parent=1 // pred_region
      %73 = dma.done [#allocation7], 2048
    $region37: #{lstm_bch_forward.1} parent=1 // pred_fallthru
      _
    // Predicated region
    $region38: #{lstm_bch_forward.1} parent=1 // pred_check
      _
    $region39: #{lstm_bch_forward.1} parent=1 // pred_check_branch
      %75 = sbr.rel (0) target = $region41
    $region40: #{lstm_bch_forward.1} parent=1 // pred_region
      %76 = dma.done [#allocation10], 512
    $region41: #{lstm_bch_forward.1} parent=1 // pred_fallthru
      _
    %v77 = vld [vmem:[#allocation3] sm:$0xff]
    %v78 = vld [vmem:[#allocation6] sm:$0xff]
    %v79 = vld [vmem:[#allocation6 + $0x8] sm:$0xff]
    %v80 = vld [vmem:[#allocation6 + $0x10] sm:$0xff]
    %v81 = vld [vmem:[#allocation6 + $0x18] sm:$0xff]
    %v82 = vld [vmem:[#allocation6 + $0x20] sm:$0xff]
    %v83 = vld [vmem:[#allocation6 + $0x28] sm:$0xff]
    %v84 = vld [vmem:[#allocation6 + $0x30] sm:$0xff]
    %v85 = vld [vmem:[#allocation6 + $0x38] sm:$0xff]
    %v86 = vld [vmem:[%s3] sm:$0xf]
    %v88 = vlaneseq
    %v89 = vshrl.u32 %v88, 7
    %v90 = vsub.s32 0, %v89
    %v91 = vrot.slane %v86, %v90
    %v92 = vlaneseq
    %v93 = vshrl.u32 %v92, 7
    %v94 = vsub.s32 1, %v93
    %v95 = vrot.slane %v86, %v94
    %v96 = vlaneseq
    %v97 = vshrl.u32 %v96, 7
    %v98 = vsub.s32 2, %v97
    %v99 = vrot.slane %v86, %v98
    %v100 = vlaneseq
    %v101 = vshrl.u32 %v100, 7
    %v102 = vsub.s32 3, %v101
    %v103 = vrot.slane %v86, %v102
    %vm108 = vcmask 130048
    %v110 = vsel %vm108, %v77, 0
    %112 = vmatprep.subr.mxu0 %v79
    %113 = vmatpush1.msra.mxu0 %v78
    %114 = vmatprep.subr.mxu0 %v83
    %115 = vmatpush1.msra.mxu0 %v82
    %116 = vmatprep.subr.mxu0 0.0
    %117 = vmatpush1.msra.mxu0 0.0
    %118 = vmatprep.subr.mxu0 0.0
    %119 = vmatpush1.msra.mxu0 0.0
    %120 = vmatprep.subr.mxu0 0.0
    %121 = vmatpush1.msra.mxu0 0.0
    %122 = vmatprep.subr.mxu0 0.0
    %123 = vmatpush1.msra.mxu0 0.0
    %124 = vmatprep.subr.mxu0 0.0
    %125 = vmatpush1.msra.mxu0 0.0
    %126 = vmatprep.subr.mxu0 0.0
    %127 = vmatpush1.msra.mxu0 0.0
    %128 = vmatprep.subr.mxu0 0.0
    %129 = vmatpush1.msra.mxu0 0.0
    %130 = vmatprep.subr.mxu0 0.0
    %131 = vmatpush1.msra.mxu0 0.0
    %132 = vmatprep.subr.mxu0 0.0
    %133 = vmatpush1.msra.mxu0 0.0
    %134 = vmatprep.subr.mxu0 0.0
    %135 = vmatpush1.msra.mxu0 0.0
    %136 = vmatprep.subr.mxu0 0.0
    %137 = vmatpush1.msra.mxu0 0.0
    %138 = vmatprep.subr.mxu0 0.0
    %139 = vmatpush1.msra.mxu0 0.0
    %140 = vmatprep.subr.mxu0 0.0
    %141 = vmatpush1.msra.mxu0 0.0
    %142 = vmatprep.subr.mxu0 0.0
    %143 = vmatpush1.msra.mxu0 0.0
    %144 = vmatprep.subr.mxu0 0.0
    %145 = vmatpush1.msra.mxu0 0.0
    %146 = vmatprep.subr.mxu0 0.0
    %147 = vmatpush1.msra.mxu0 0.0
    %148 = vmatprep.subr.mxu0 0.0
    %149 = vmatpush1.msra.mxu0 0.0
    %150 = vmatprep.subr.mxu0 0.0
    %151 = vmatpush1.msra.mxu0 0.0
    %152 = vmatprep.subr.mxu0 0.0
    %153 = vmatpush1.msra.mxu0 0.0
    %154 = vmatprep.subr.mxu0 0.0
    %155 = vmatpush1.msra.mxu0 0.0
    %156 = vmatprep.subr.mxu0 0.0
    %157 = vmatpush1.msra.mxu0 0.0
    %158 = vmatprep.subr.mxu0 0.0
    %159 = vmatpush1.msra.mxu0 0.0
    %160 = vmatprep.subr.mxu0 0.0
    %161 = vmatpush1.msra.mxu0 0.0
    %162 = vmatprep.subr.mxu0 0.0
    %163 = vmatpush1.msra.mxu0 0.0
    %164 = vmatprep.subr.mxu0 0.0
    %165 = vmatpush1.msra.mxu0 0.0
    %166 = vmatprep.subr.mxu0 0.0
    %167 = vmatpush1.msra.mxu0 0.0
    %168 = vmatprep.subr.mxu0 0.0
    %169 = vmatpush1.msra.mxu0 0.0
    %170 = vmatprep.subr.mxu0 0.0
    %171 = vmatpush1.msra.mxu0 0.0
    %172 = vmatprep.subr.mxu0 0.0
    %173 = vmatpush1.msra.mxu0 0.0
    %174 = vmatprep.subr.mxu0 0.0
    %175 = vmatpush1.msra.mxu0 0.0
    %176 = vmatprep.mubr.f32.mxu0 0.0
    %177 = vmatmul.mubr.f32.gmra.mrb[0].mxu0 %v110
    %v178 = vpop.f32.mrb[0].mxu0
    %v179 = vadd.f32 %v91, %v178
    %v180 = vpop.f32.mrb[0].mxu0
    %v181 = vadd.f32 %v95, %v180
    %182 = vdwg.mxu0
    %183 = vmatprep.subr.mxu0 %v81
    %184 = vmatpush1.msra.mxu0 %v80
    %185 = vmatprep.subr.mxu0 %v85
    %186 = vmatpush1.msra.mxu0 %v84
    %187 = vmatprep.subr.mxu0 0.0
    %188 = vmatpush1.msra.mxu0 0.0
    %189 = vmatprep.subr.mxu0 0.0
    %190 = vmatpush1.msra.mxu0 0.0
    %191 = vmatprep.subr.mxu0 0.0
    %192 = vmatpush1.msra.mxu0 0.0
    %193 = vmatprep.subr.mxu0 0.0
    %194 = vmatpush1.msra.mxu0 0.0
    %195 = vmatprep.subr.mxu0 0.0
    %196 = vmatpush1.msra.mxu0 0.0
    %197 = vmatprep.subr.mxu0 0.0
    %198 = vmatpush1.msra.mxu0 0.0
    %199 = vmatprep.subr.mxu0 0.0
    %200 = vmatpush1.msra.mxu0 0.0
    %201 = vmatprep.subr.mxu0 0.0
    %202 = vmatpush1.msra.mxu0 0.0
    %203 = vmatprep.subr.mxu0 0.0
    %204 = vmatpush1.msra.mxu0 0.0
    %205 = vmatprep.subr.mxu0 0.0
    %206 = vmatpush1.msra.mxu0 0.0
    %207 = vmatprep.subr.mxu0 0.0
    %208 = vmatpush1.msra.mxu0 0.0
    %209 = vmatprep.subr.mxu0 0.0
    %210 = vmatpush1.msra.mxu0 0.0
    %211 = vmatprep.subr.mxu0 0.0
    %212 = vmatpush1.msra.mxu0 0.0
    %213 = vmatprep.subr.mxu0 0.0
    %214 = vmatpush1.msra.mxu0 0.0
    %215 = vmatprep.subr.mxu0 0.0
    %216 = vmatpush1.msra.mxu0 0.0
    %217 = vmatprep.subr.mxu0 0.0
    %218 = vmatpush1.msra.mxu0 0.0
    %219 = vmatprep.subr.mxu0 0.0
    %220 = vmatpush1.msra.mxu0 0.0
    %221 = vmatprep.subr.mxu0 0.0
    %222 = vmatpush1.msra.mxu0 0.0
    %223 = vmatprep.subr.mxu0 0.0
    %224 = vmatpush1.msra.mxu0 0.0
    %225 = vmatprep.subr.mxu0 0.0
    %226 = vmatpush1.msra.mxu0 0.0
    %227 = vmatprep.subr.mxu0 0.0
    %228 = vmatpush1.msra.mxu0 0.0
    %229 = vmatprep.subr.mxu0 0.0
    %230 = vmatpush1.msra.mxu0 0.0
    %231 = vmatprep.subr.mxu0 0.0
    %232 = vmatpush1.msra.mxu0 0.0
    %233 = vmatprep.subr.mxu0 0.0
    %234 = vmatpush1.msra.mxu0 0.0
    %235 = vmatprep.subr.mxu0 0.0
    %236 = vmatpush1.msra.mxu0 0.0
    %237 = vmatprep.subr.mxu0 0.0
    %238 = vmatpush1.msra.mxu0 0.0
    %239 = vmatprep.subr.mxu0 0.0
    %240 = vmatpush1.msra.mxu0 0.0
    %241 = vmatprep.subr.mxu0 0.0
    %242 = vmatpush1.msra.mxu0 0.0
    %243 = vmatprep.subr.mxu0 0.0
    %244 = vmatpush1.msra.mxu0 0.0
    %245 = vmatprep.subr.mxu0 0.0
    %246 = vmatpush1.msra.mxu0 0.0
    %247 = vmatprep.mubr.f32.mxu0 0.0
    %248 = vmatmul.mubr.f32.gmra.mrb[0].mxu0 %v110
    %v249 = vpop.f32.mrb[0].mxu0
    %v250 = vadd.f32 %v99, %v249
    %v251 = vpop.f32.mrb[0].mxu0
    %v252 = vadd.f32 %v103, %v251
    %253 = vdwg.mxu0
    %v254 = vld [vmem:[#allocation8] sm:$0xff]
    %v255 = vld [vmem:[#allocation8 + $0x8] sm:$0xff]
    %v256 = vld [vmem:[#allocation8 + $0x10] sm:$0xff]
    %v257 = vld [vmem:[#allocation8 + $0x18] sm:$0xff]
    %v258 = vld [vmem:[#allocation8 + $0x20] sm:$0xff]
    %v259 = vld [vmem:[#allocation8 + $0x28] sm:$0xff]
    %v260 = vld [vmem:[#allocation8 + $0x30] sm:$0xff]
    %v261 = vld [vmem:[#allocation8 + $0x38] sm:$0xff]
    %v262 = vld [vmem:[#allocation8 + $0x40] sm:$0xff]
    %v263 = vld [vmem:[#allocation8 + $0x48] sm:$0xff]
    %v264 = vld [vmem:[#allocation8 + $0x50] sm:$0xff]
    %v265 = vld [vmem:[#allocation8 + $0x58] sm:$0xff]
    %v266 = vld [vmem:[#allocation8 + $0x60] sm:$0xff]
    %v267 = vld [vmem:[#allocation8 + $0x68] sm:$0xff]
    %v268 = vld [vmem:[#allocation8 + $0x70] sm:$0xff]
    %v269 = vld [vmem:[#allocation8 + $0x78] sm:$0xff]
    %vm270 = vcmask 261120
    %v272 = vsel %vm270, 0.0, 0
    %274 = vmatprep.subr.mxu0 %v255
    %275 = vmatpush1.msra.mxu0 %v254
    %276 = vmatprep.subr.mxu0 %v259
    %277 = vmatpush1.msra.mxu0 %v258
    %278 = vmatprep.subr.mxu0 %v263
    %279 = vmatpush1.msra.mxu0 %v262
    %280 = vmatprep.subr.mxu0 %v267
    %281 = vmatpush1.msra.mxu0 %v266
    %282 = vmatprep.subr.mxu0 0.0
    %283 = vmatpush1.msra.mxu0 0.0
    %284 = vmatprep.subr.mxu0 0.0
    %285 = vmatpush1.msra.mxu0 0.0
    %286 = vmatprep.subr.mxu0 0.0
    %287 = vmatpush1.msra.mxu0 0.0
    %288 = vmatprep.subr.mxu0 0.0
    %289 = vmatpush1.msra.mxu0 0.0
    %290 = vmatprep.subr.mxu0 0.0
    %291 = vmatpush1.msra.mxu0 0.0
    %292 = vmatprep.subr.mxu0 0.0
    %293 = vmatpush1.msra.mxu0 0.0
    %294 = vmatprep.subr.mxu0 0.0
    %295 = vmatpush1.msra.mxu0 0.0
    %296 = vmatprep.subr.mxu0 0.0
    %297 = vmatpush1.msra.mxu0 0.0
    %298 = vmatprep.subr.mxu0 0.0
    %299 = vmatpush1.msra.mxu0 0.0
    %300 = vmatprep.subr.mxu0 0.0
    %301 = vmatpush1.msra.mxu0 0.0
    %302 = vmatprep.subr.mxu0 0.0
    %303 = vmatpush1.msra.mxu0 0.0
    %304 = vmatprep.subr.mxu0 0.0
    %305 = vmatpush1.msra.mxu0 0.0
    %306 = vmatprep.subr.mxu0 0.0
    %307 = vmatpush1.msra.mxu0 0.0
    %308 = vmatprep.subr.mxu0 0.0
    %309 = vmatpush1.msra.mxu0 0.0
    %310 = vmatprep.subr.mxu0 0.0
    %311 = vmatpush1.msra.mxu0 0.0
    %312 = vmatprep.subr.mxu0 0.0
    %313 = vmatpush1.msra.mxu0 0.0
    %314 = vmatprep.subr.mxu0 0.0
    %315 = vmatpush1.msra.mxu0 0.0
    %316 = vmatprep.subr.mxu0 0.0
    %317 = vmatpush1.msra.mxu0 0.0
    %318 = vmatprep.subr.mxu0 0.0
    %319 = vmatpush1.msra.mxu0 0.0
    %320 = vmatprep.subr.mxu0 0.0
    %321 = vmatpush1.msra.mxu0 0.0
    %322 = vmatprep.subr.mxu0 0.0
    %323 = vmatpush1.msra.mxu0 0.0
    %324 = vmatprep.subr.mxu0 0.0
    %325 = vmatpush1.msra.mxu0 0.0
    %326 = vmatprep.subr.mxu0 0.0
    %327 = vmatpush1.msra.mxu0 0.0
    %328 = vmatprep.subr.mxu0 0.0
    %329 = vmatpush1.msra.mxu0 0.0
    %330 = vmatprep.subr.mxu0 0.0
    %331 = vmatpush1.msra.mxu0 0.0
    %332 = vmatprep.subr.mxu0 0.0
    %333 = vmatpush1.msra.mxu0 0.0
    %334 = vmatprep.subr.mxu0 0.0
    %335 = vmatpush1.msra.mxu0 0.0
    %336 = vmatprep.subr.mxu0 0.0
    %337 = vmatpush1.msra.mxu0 0.0
    %338 = vmatprep.mubr.f32.mxu0 0.0
    %339 = vmatmul.mubr.f32.gmra.mrb[0].mxu0 %v272
    %v340 = vpop.f32.mrb[0].mxu0
    %v341 = vadd.f32 0.0, %v340
    %v342 = vpop.f32.mrb[0].mxu0
    %v343 = vadd.f32 0.0, %v342
    %344 = vdwg.mxu0
    %345 = vmatprep.subr.mxu0 %v257
    %346 = vmatpush1.msra.mxu0 %v256
    %347 = vmatprep.subr.mxu0 %v261
    %348 = vmatpush1.msra.mxu0 %v260
    %349 = vmatprep.subr.mxu0 %v265
    %350 = vmatpush1.msra.mxu0 %v264
    %351 = vmatprep.subr.mxu0 %v269
    %352 = vmatpush1.msra.mxu0 %v268
    %353 = vmatprep.subr.mxu0 0.0
    %354 = vmatpush1.msra.mxu0 0.0
    %355 = vmatprep.subr.mxu0 0.0
    %356 = vmatpush1.msra.mxu0 0.0
    %357 = vmatprep.subr.mxu0 0.0
    %358 = vmatpush1.msra.mxu0 0.0
    %359 = vmatprep.subr.mxu0 0.0
    %360 = vmatpush1.msra.mxu0 0.0
    %361 = vmatprep.subr.mxu0 0.0
    %362 = vmatpush1.msra.mxu0 0.0
    %363 = vmatprep.subr.mxu0 0.0
    %364 = vmatpush1.msra.mxu0 0.0
    %365 = vmatprep.subr.mxu0 0.0
    %366 = vmatpush1.msra.mxu0 0.0
    %367 = vmatprep.subr.mxu0 0.0
    %368 = vmatpush1.msra.mxu0 0.0
    %369 = vmatprep.subr.mxu0 0.0
    %370 = vmatpush1.msra.mxu0 0.0
    %371 = vmatprep.subr.mxu0 0.0
    %372 = vmatpush1.msra.mxu0 0.0
    %373 = vmatprep.subr.mxu0 0.0
    %374 = vmatpush1.msra.mxu0 0.0
    %375 = vmatprep.subr.mxu0 0.0
    %376 = vmatpush1.msra.mxu0 0.0
    %377 = vmatprep.subr.mxu0 0.0
    %378 = vmatpush1.msra.mxu0 0.0
    %379 = vmatprep.subr.mxu0 0.0
    %380 = vmatpush1.msra.mxu0 0.0
    %381 = vmatprep.subr.mxu0 0.0
    %382 = vmatpush1.msra.mxu0 0.0
    %383 = vmatprep.subr.mxu0 0.0
    %384 = vmatpush1.msra.mxu0 0.0
    %385 = vmatprep.subr.mxu0 0.0
    %386 = vmatpush1.msra.mxu0 0.0
    %387 = vmatprep.subr.mxu0 0.0
    %388 = vmatpush1.msra.mxu0 0.0
    %389 = vmatprep.subr.mxu0 0.0
    %390 = vmatpush1.msra.mxu0 0.0
    %391 = vmatprep.subr.mxu0 0.0
    %392 = vmatpush1.msra.mxu0 0.0
    %393 = vmatprep.subr.mxu0 0.0
    %394 = vmatpush1.msra.mxu0 0.0
    %395 = vmatprep.subr.mxu0 0.0
    %396 = vmatpush1.msra.mxu0 0.0
    %397 = vmatprep.subr.mxu0 0.0
    %398 = vmatpush1.msra.mxu0 0.0
    %399 = vmatprep.subr.mxu0 0.0
    %400 = vmatpush1.msra.mxu0 0.0
    %401 = vmatprep.subr.mxu0 0.0
    %402 = vmatpush1.msra.mxu0 0.0
    %403 = vmatprep.subr.mxu0 0.0
    %404 = vmatpush1.msra.mxu0 0.0
    %405 = vmatprep.subr.mxu0 0.0
    %406 = vmatpush1.msra.mxu0 0.0
    %407 = vmatprep.subr.mxu0 0.0
    %408 = vmatpush1.msra.mxu0 0.0
    %409 = vmatprep.mubr.f32.mxu0 0.0
    %410 = vmatmul.mubr.f32.gmra.mrb[0].mxu0 %v272
    %v411 = vpop.f32.mrb[0].mxu0
    %v412 = vadd.f32 0.0, %v411
    %v413 = vpop.f32.mrb[0].mxu0
    %v414 = vadd.f32 0.0, %v413
    %415 = vdwg.mxu0
    %v416 = vadd.f32 %v179, %v341
    %v417 = vadd.f32 %v181, %v343
    %v418 = vadd.f32 %v250, %v412
    %v419 = vadd.f32 %v252, %v414
    %v420 = vxor.u32 %v416, 2147483648
    %v421 = vmul.f32 %v420, 1.442695
    %v422 = vpow.pop %v421
    %v423 = vadd.f32 %v422, 1.0
    %v424 = vrcp.pop %v423
    %v425 = vmul.f32 1.0, %v424
    %v426 = vxor.u32 %v417, 2147483648
    %v427 = vmul.f32 %v426, 1.442695
    %v428 = vpow.pop %v427
    %v429 = vadd.f32 %v428, 1.0
    %v430 = vrcp.pop %v429
    %v431 = vmul.f32 1.0, %v430
    %v432 = vtanh.pop %v418
    %v433 = vxor.u32 %v419, 2147483648
    %v434 = vmul.f32 %v433, 1.442695
    %v435 = vpow.pop %v434
    %v436 = vadd.f32 %v435, 1.0
    %v437 = vrcp.pop %v436
    %v438 = vmul.f32 1.0, %v437
    %v439 = vmul.f32 %v431, 0.0
    %v440 = vmul.f32 %v425, %v432
    %v441 = vadd.f32 %v439, %v440
    %v442 = vtanh.pop %v441
    %v443 = vmul.f32 %v438, %v442
    %vm444 = vcmask 253952
    %445 = vst.msk [vmem:[#allocation2] sm:$0x1] %vm444, %v443
    %v447 = vsel %vm270, %v443, 0
    %449 = vmatprep.subr.mxu0 %v255
    %450 = vmatpush1.msra.mxu0 %v254
    %451 = vmatprep.subr.mxu0 %v259
    %452 = vmatpush1.msra.mxu0 %v258
    %453 = vmatprep.subr.mxu0 %v263
    %454 = vmatpush1.msra.mxu0 %v262
    %455 = vmatprep.subr.mxu0 %v267
    %456 = vmatpush1.msra.mxu0 %v266
    %457 = vmatprep.subr.mxu0 0.0
    %458 = vmatpush1.msra.mxu0 0.0
    %459 = vmatprep.subr.mxu0 0.0
    %460 = vmatpush1.msra.mxu0 0.0
    %461 = vmatprep.subr.mxu0 0.0
    %462 = vmatpush1.msra.mxu0 0.0
    %463 = vmatprep.subr.mxu0 0.0
    %464 = vmatpush1.msra.mxu0 0.0
    %465 = vmatprep.subr.mxu0 0.0
    %466 = vmatpush1.msra.mxu0 0.0
    %467 = vmatprep.subr.mxu0 0.0
    %468 = vmatpush1.msra.mxu0 0.0
    %469 = vmatprep.subr.mxu0 0.0
    %470 = vmatpush1.msra.mxu0 0.0
    %471 = vmatprep.subr.mxu0 0.0
    %472 = vmatpush1.msra.mxu0 0.0
    %473 = vmatprep.subr.mxu0 0.0
    %474 = vmatpush1.msra.mxu0 0.0
    %475 = vmatprep.subr.mxu0 0.0
    %476 = vmatpush1.msra.mxu0 0.0
    %477 = vmatprep.subr.mxu0 0.0
    %478 = vmatpush1.msra.mxu0 0.0
    %479 = vmatprep.subr.mxu0 0.0
    %480 = vmatpush1.msra.mxu0 0.0
    %481 = vmatprep.subr.mxu0 0.0
    %482 = vmatpush1.msra.mxu0 0.0
    %483 = vmatprep.subr.mxu0 0.0
    %484 = vmatpush1.msra.mxu0 0.0
    %485 = vmatprep.subr.mxu0 0.0
    %486 = vmatpush1.msra.mxu0 0.0
    %487 = vmatprep.subr.mxu0 0.0
    %488 = vmatpush1.msra.mxu0 0.0
    %489 = vmatprep.subr.mxu0 0.0
    %490 = vmatpush1.msra.mxu0 0.0
    %491 = vmatprep.subr.mxu0 0.0
    %492 = vmatpush1.msra.mxu0 0.0
    %493 = vmatprep.subr.mxu0 0.0
    %494 = vmatpush1.msra.mxu0 0.0
    %495 = vmatprep.subr.mxu0 0.0
    %496 = vmatpush1.msra.mxu0 0.0
    %497 = vmatprep.subr.mxu0 0.0
    %498 = vmatpush1.msra.mxu0 0.0
    %499 = vmatprep.subr.mxu0 0.0
    %500 = vmatpush1.msra.mxu0 0.0
    %501 = vmatprep.subr.mxu0 0.0
    %502 = vmatpush1.msra.mxu0 0.0
    %503 = vmatprep.subr.mxu0 0.0
    %504 = vmatpush1.msra.mxu0 0.0
    %505 = vmatprep.subr.mxu0 0.0
    %506 = vmatpush1.msra.mxu0 0.0
    %507 = vmatprep.subr.mxu0 0.0
    %508 = vmatpush1.msra.mxu0 0.0
    %509 = vmatprep.subr.mxu0 0.0
    %510 = vmatpush1.msra.mxu0 0.0
    %511 = vmatprep.subr.mxu0 0.0
    %512 = vmatpush1.msra.mxu0 0.0
    %513 = vmatprep.mubr.f32.mxu0 0.0
    %514 = vmatmul.mubr.f32.gmra.mrb[0].mxu0 %v447
    %v515 = vpop.f32.mrb[0].mxu0
    %v516 = vadd.f32 0.0, %v515
    %v517 = vpop.f32.mrb[0].mxu0
    %v518 = vadd.f32 0.0, %v517
    %519 = vdwg.mxu0
    %520 = vmatprep.subr.mxu0 %v257
    %521 = vmatpush1.msra.mxu0 %v256
    %522 = vmatprep.subr.mxu0 %v261
    %523 = vmatpush1.msra.mxu0 %v260
    %524 = vmatprep.subr.mxu0 %v265
    %525 = vmatpush1.msra.mxu0 %v264
    %526 = vmatprep.subr.mxu0 %v269
    %527 = vmatpush1.msra.mxu0 %v268
    %528 = vmatprep.subr.mxu0 0.0
    %529 = vmatpush1.msra.mxu0 0.0
    %530 = vmatprep.subr.mxu0 0.0
    %531 = vmatpush1.msra.mxu0 0.0
    %532 = vmatprep.subr.mxu0 0.0
    %533 = vmatpush1.msra.mxu0 0.0
    %534 = vmatprep.subr.mxu0 0.0
    %535 = vmatpush1.msra.mxu0 0.0
    %536 = vmatprep.subr.mxu0 0.0
    %537 = vmatpush1.msra.mxu0 0.0
    %538 = vmatprep.subr.mxu0 0.0
    %539 = vmatpush1.msra.mxu0 0.0
    %540 = vmatprep.subr.mxu0 0.0
    %541 = vmatpush1.msra.mxu0 0.0
    %542 = vmatprep.subr.mxu0 0.0
    %543 = vmatpush1.msra.mxu0 0.0
    %544 = vmatprep.subr.mxu0 0.0
    %545 = vmatpush1.msra.mxu0 0.0
    %546 = vmatprep.subr.mxu0 0.0
    %547 = vmatpush1.msra.mxu0 0.0
    %548 = vmatprep.subr.mxu0 0.0
    %549 = vmatpush1.msra.mxu0 0.0
    %550 = vmatprep.subr.mxu0 0.0
    %551 = vmatpush1.msra.mxu0 0.0
    %552 = vmatprep.subr.mxu0 0.0
    %553 = vmatpush1.msra.mxu0 0.0
    %554 = vmatprep.subr.mxu0 0.0
    %555 = vmatpush1.msra.mxu0 0.0
    %556 = vmatprep.subr.mxu0 0.0
    %557 = vmatpush1.msra.mxu0 0.0
    %558 = vmatprep.subr.mxu0 0.0
    %559 = vmatpush1.msra.mxu0 0.0
    %560 = vmatprep.subr.mxu0 0.0
    %561 = vmatpush1.msra.mxu0 0.0
    %562 = vmatprep.subr.mxu0 0.0
    %563 = vmatpush1.msra.mxu0 0.0
    %564 = vmatprep.subr.mxu0 0.0
    %565 = vmatpush1.msra.mxu0 0.0
    %566 = vmatprep.subr.mxu0 0.0
    %567 = vmatpush1.msra.mxu0 0.0
    %568 = vmatprep.subr.mxu0 0.0
    %569 = vmatpush1.msra.mxu0 0.0
    %570 = vmatprep.subr.mxu0 0.0
    %571 = vmatpush1.msra.mxu0 0.0
    %572 = vmatprep.subr.mxu0 0.0
    %573 = vmatpush1.msra.mxu0 0.0
    %574 = vmatprep.subr.mxu0 0.0
    %575 = vmatpush1.msra.mxu0 0.0
    %576 = vmatprep.subr.mxu0 0.0
    %577 = vmatpush1.msra.mxu0 0.0
    %578 = vmatprep.subr.mxu0 0.0
    %579 = vmatpush1.msra.mxu0 0.0
    %580 = vmatprep.subr.mxu0 0.0
    %581 = vmatpush1.msra.mxu0 0.0
    %582 = vmatprep.subr.mxu0 0.0
    %583 = vmatpush1.msra.mxu0 0.0
    %584 = vmatprep.mubr.f32.mxu0 0.0
    %585 = vmatmul.mubr.f32.gmra.mrb[0].mxu0 %v447
    %v586 = vpop.f32.mrb[0].mxu0
    %v587 = vadd.f32 0.0, %v586
    %v588 = vpop.f32.mrb[0].mxu0
    %v589 = vadd.f32 0.0, %v588
    %590 = vdwg.mxu0
    %v595 = vrot.slane %v516, 7
    %v596 = vrot.slane %v518, 7
    %v597 = vrot.slane %v587, 7
    %v598 = vrot.slane %v589, 7
    %v603 = vadd.f32 %v179, %v595
    %v604 = vadd.f32 %v181, %v596
    %v605 = vadd.f32 %v250, %v597
    %v606 = vadd.f32 %v252, %v598
    %v607 = vxor.u32 %v603, 2147483648
    %v608 = vmul.f32 %v607, 1.442695
    %v609 = vpow.pop %v608
    %v610 = vadd.f32 %v609, 1.0
    %v611 = vrcp.pop %v610
    %v612 = vmul.f32 1.0, %v611
    %v613 = vxor.u32 %v604, 2147483648
    %v614 = vmul.f32 %v613, 1.442695
    %v615 = vpow.pop %v614
    %v616 = vadd.f32 %v615, 1.0
    %v617 = vrcp.pop %v616
    %v618 = vmul.f32 1.0, %v617
    %v619 = vtanh.pop %v605
    %v620 = vxor.u32 %v606, 2147483648
    %v621 = vmul.f32 %v620, 1.442695
    %v622 = vpow.pop %v621
    %v623 = vadd.f32 %v622, 1.0
    %v624 = vrcp.pop %v623
    %v625 = vmul.f32 1.0, %v624
    %v627 = vrot.slane %v441, 7
    %v629 = vmul.f32 %v618, %v627
    %v630 = vmul.f32 %v612, %v619
    %v631 = vadd.f32 %v629, %v630
    %v632 = vtanh.pop %v631
    %v633 = vmul.f32 %v625, %v632
    %vm634 = vcmask 254977
    %635 = vst.msk [vmem:[#allocation2] sm:$0x2] %vm634, %v633
    %v637 = vrot.slane %v633, 1
    %v638 = vsel %vm270, %v637, 0
    %640 = vmatprep.subr.mxu0 %v255
    %641 = vmatpush1.msra.mxu0 %v254
    %642 = vmatprep.subr.mxu0 %v259
    %643 = vmatpush1.msra.mxu0 %v258
    %644 = vmatprep.subr.mxu0 %v263
    %645 = vmatpush1.msra.mxu0 %v262
    %646 = vmatprep.subr.mxu0 %v267
    %647 = vmatpush1.msra.mxu0 %v266
    %648 = vmatprep.subr.mxu0 0.0
    %649 = vmatpush1.msra.mxu0 0.0
    %650 = vmatprep.subr.mxu0 0.0
    %651 = vmatpush1.msra.mxu0 0.0
    %652 = vmatprep.subr.mxu0 0.0
    %653 = vmatpush1.msra.mxu0 0.0
    %654 = vmatprep.subr.mxu0 0.0
    %655 = vmatpush1.msra.mxu0 0.0
    %656 = vmatprep.subr.mxu0 0.0
    %657 = vmatpush1.msra.mxu0 0.0
    %658 = vmatprep.subr.mxu0 0.0
    %659 = vmatpush1.msra.mxu0 0.0
    %660 = vmatprep.subr.mxu0 0.0
    %661 = vmatpush1.msra.mxu0 0.0
    %662 = vmatprep.subr.mxu0 0.0
    %663 = vmatpush1.msra.mxu0 0.0
    %664 = vmatprep.subr.mxu0 0.0
    %665 = vmatpush1.msra.mxu0 0.0
    %666 = vmatprep.subr.mxu0 0.0
    %667 = vmatpush1.msra.mxu0 0.0
    %668 = vmatprep.subr.mxu0 0.0
    %669 = vmatpush1.msra.mxu0 0.0
    %670 = vmatprep.subr.mxu0 0.0
    %671 = vmatpush1.msra.mxu0 0.0
    %672 = vmatprep.subr.mxu0 0.0
    %673 = vmatpush1.msra.mxu0 0.0
    %674 = vmatprep.subr.mxu0 0.0
    %675 = vmatpush1.msra.mxu0 0.0
    %676 = vmatprep.subr.mxu0 0.0
    %677 = vmatpush1.msra.mxu0 0.0
    %678 = vmatprep.subr.mxu0 0.0
    %679 = vmatpush1.msra.mxu0 0.0
    %680 = vmatprep.subr.mxu0 0.0
    %681 = vmatpush1.msra.mxu0 0.0
    %682 = vmatprep.subr.mxu0 0.0
    %683 = vmatpush1.msra.mxu0 0.0
    %684 = vmatprep.subr.mxu0 0.0
    %685 = vmatpush1.msra.mxu0 0.0
    %686 = vmatprep.subr.mxu0 0.0
    %687 = vmatpush1.msra.mxu0 0.0
    %688 = vmatprep.subr.mxu0 0.0
    %689 = vmatpush1.msra.mxu0 0.0
    %690 = vmatprep.subr.mxu0 0.0
    %691 = vmatpush1.msra.mxu0 0.0
    %692 = vmatprep.subr.mxu0 0.0
    %693 = vmatpush1.msra.mxu0 0.0
    %694 = vmatprep.subr.mxu0 0.0
    %695 = vmatpush1.msra.mxu0 0.0
    %696 = vmatprep.subr.mxu0 0.0
    %697 = vmatpush1.msra.mxu0 0.0
    %698 = vmatprep.subr.mxu0 0.0
    %699 = vmatpush1.msra.mxu0 0.0
    %700 = vmatprep.subr.mxu0 0.0
    %701 = vmatpush1.msra.mxu0 0.0
    %702 = vmatprep.subr.mxu0 0.0
    %703 = vmatpush1.msra.mxu0 0.0
    %704 = vmatprep.mubr.f32.mxu0 0.0
    %705 = vmatmul.mubr.f32.gmra.mrb[0].mxu0 %v638
    %v706 = vpop.f32.mrb[0].mxu0
    %v707 = vadd.f32 0.0, %v706
    %v708 = vpop.f32.mrb[0].mxu0
    %v709 = vadd.f32 0.0, %v708
    %710 = vdwg.mxu0
    %711 = vmatprep.subr.mxu0 %v257
    %712 = vmatpush1.msra.mxu0 %v256
    %713 = vmatprep.subr.mxu0 %v261
    %714 = vmatpush1.msra.mxu0 %v260
    %715 = vmatprep.subr.mxu0 %v265
    %716 = vmatpush1.msra.mxu0 %v264
    %717 = vmatprep.subr.mxu0 %v269
    %718 = vmatpush1.msra.mxu0 %v268
    %719 = vmatprep.subr.mxu0 0.0
    %720 = vmatpush1.msra.mxu0 0.0
    %721 = vmatprep.subr.mxu0 0.0
    %722 = vmatpush1.msra.mxu0 0.0
    %723 = vmatprep.subr.mxu0 0.0
    %724 = vmatpush1.msra.mxu0 0.0
    %725 = vmatprep.subr.mxu0 0.0
    %726 = vmatpush1.msra.mxu0 0.0
    %727 = vmatprep.subr.mxu0 0.0
    %728 = vmatpush1.msra.mxu0 0.0
    %729 = vmatprep.subr.mxu0 0.0
    %730 = vmatpush1.msra.mxu0 0.0
    %731 = vmatprep.subr.mxu0 0.0
    %732 = vmatpush1.msra.mxu0 0.0
    %733 = vmatprep.subr.mxu0 0.0
    %734 = vmatpush1.msra.mxu0 0.0
    %735 = vmatprep.subr.mxu0 0.0
    %736 = vmatpush1.msra.mxu0 0.0
    %737 = vmatprep.subr.mxu0 0.0
    %738 = vmatpush1.msra.mxu0 0.0
    %739 = vmatprep.subr.mxu0 0.0
    %740 = vmatpush1.msra.mxu0 0.0
    %741 = vmatprep.subr.mxu0 0.0
    %742 = vmatpush1.msra.mxu0 0.0
    %743 = vmatprep.subr.mxu0 0.0
    %744 = vmatpush1.msra.mxu0 0.0
    %745 = vmatprep.subr.mxu0 0.0
    %746 = vmatpush1.msra.mxu0 0.0
    %747 = vmatprep.subr.mxu0 0.0
    %748 = vmatpush1.msra.mxu0 0.0
    %749 = vmatprep.subr.mxu0 0.0
    %750 = vmatpush1.msra.mxu0 0.0
    %751 = vmatprep.subr.mxu0 0.0
    %752 = vmatpush1.msra.mxu0 0.0
    %753 = vmatprep.subr.mxu0 0.0
    %754 = vmatpush1.msra.mxu0 0.0
    %755 = vmatprep.subr.mxu0 0.0
    %756 = vmatpush1.msra.mxu0 0.0
    %757 = vmatprep.subr.mxu0 0.0
    %758 = vmatpush1.msra.mxu0 0.0
    %759 = vmatprep.subr.mxu0 0.0
    %760 = vmatpush1.msra.mxu0 0.0
    %761 = vmatprep.subr.mxu0 0.0
    %762 = vmatpush1.msra.mxu0 0.0
    %763 = vmatprep.subr.mxu0 0.0
    %764 = vmatpush1.msra.mxu0 0.0
    %765 = vmatprep.subr.mxu0 0.0
    %766 = vmatpush1.msra.mxu0 0.0
    %767 = vmatprep.subr.mxu0 0.0
    %768 = vmatpush1.msra.mxu0 0.0
    %769 = vmatprep.subr.mxu0 0.0
    %770 = vmatpush1.msra.mxu0 0.0
    %771 = vmatprep.subr.mxu0 0.0
    %772 = vmatpush1.msra.mxu0 0.0
    %773 = vmatprep.subr.mxu0 0.0
    %774 = vmatpush1.msra.mxu0 0.0
    %775 = vmatprep.mubr.f32.mxu0 0.0
    %776 = vmatmul.mubr.f32.gmra.mrb[0].mxu0 %v638
    %v777 = vpop.f32.mrb[0].mxu0
    %v778 = vadd.f32 0.0, %v777
    %v779 = vpop.f32.mrb[0].mxu0
    %v780 = vadd.f32 0.0, %v779
    %781 = vdwg.mxu0
    %v786 = vrot.slane %v707, 6
    %v787 = vrot.slane %v709, 6
    %v788 = vrot.slane %v778, 6
    %v789 = vrot.slane %v780, 6
    %v794 = vadd.f32 %v179, %v786
    %v795 = vadd.f32 %v181, %v787
    %v796 = vadd.f32 %v250, %v788
    %v797 = vadd.f32 %v252, %v789
    %v798 = vxor.u32 %v794, 2147483648
    %v799 = vmul.f32 %v798, 1.442695
    %v800 = vpow.pop %v799
    %v801 = vadd.f32 %v800, 1.0
    %v802 = vrcp.pop %v801
    %v803 = vmul.f32 1.0, %v802
    %v804 = vxor.u32 %v795, 2147483648
    %v805 = vmul.f32 %v804, 1.442695
    %v806 = vpow.pop %v805
    %v807 = vadd.f32 %v806, 1.0
    %v808 = vrcp.pop %v807
    %v809 = vmul.f32 1.0, %v808
    %v810 = vtanh.pop %v796
    %v811 = vxor.u32 %v797, 2147483648
    %v812 = vmul.f32 %v811, 1.442695
    %v813 = vpow.pop %v812
    %v814 = vadd.f32 %v813, 1.0
    %v815 = vrcp.pop %v814
    %v816 = vmul.f32 1.0, %v815
    %v818 = vrot.slane %v631, 7
    %v820 = vmul.f32 %v809, %v818
    %v821 = vmul.f32 %v803, %v810
    %v822 = vadd.f32 %v820, %v821
    %v823 = vtanh.pop %v822
    %v824 = vmul.f32 %v816, %v823
    %vm825 = vcmask 256002
    %826 = vst.msk [vmem:[#allocation2] sm:$0x4] %vm825, %v824
    %v828 = vrot.slane %v824, 2
    %v829 = vsel %vm270, %v828, 0
    %831 = vmatprep.subr.mxu0 %v255
    %832 = vmatpush1.msra.mxu0 %v254
    %833 = vmatprep.subr.mxu0 %v259
    %834 = vmatpush1.msra.mxu0 %v258
    %835 = vmatprep.subr.mxu0 %v263
    %836 = vmatpush1.msra.mxu0 %v262
    %837 = vmatprep.subr.mxu0 %v267
    %838 = vmatpush1.msra.mxu0 %v266
    %839 = vmatprep.subr.mxu0 0.0
    %840 = vmatpush1.msra.mxu0 0.0
    %841 = vmatprep.subr.mxu0 0.0
    %842 = vmatpush1.msra.mxu0 0.0
    %843 = vmatprep.subr.mxu0 0.0
    %844 = vmatpush1.msra.mxu0 0.0
    %845 = vmatprep.subr.mxu0 0.0
    %846 = vmatpush1.msra.mxu0 0.0
    %847 = vmatprep.subr.mxu0 0.0
    %848 = vmatpush1.msra.mxu0 0.0
    %849 = vmatprep.subr.mxu0 0.0
    %850 = vmatpush1.msra.mxu0 0.0
    %851 = vmatprep.subr.mxu0 0.0
    %852 = vmatpush1.msra.mxu0 0.0
    %853 = vmatprep.subr.mxu0 0.0
    %854 = vmatpush1.msra.mxu0 0.0
    %855 = vmatprep.subr.mxu0 0.0
    %856 = vmatpush1.msra.mxu0 0.0
    %857 = vmatprep.subr.mxu0 0.0
    %858 = vmatpush1.msra.mxu0 0.0
    %859 = vmatprep.subr.mxu0 0.0
    %860 = vmatpush1.msra.mxu0 0.0
    %861 = vmatprep.subr.mxu0 0.0
    %862 = vmatpush1.msra.mxu0 0.0
    %863 = vmatprep.subr.mxu0 0.0
    %864 = vmatpush1.msra.mxu0 0.0
    %865 = vmatprep.subr.mxu0 0.0
    %866 = vmatpush1.msra.mxu0 0.0
    %867 = vmatprep.subr.mxu0 0.0
    %868 = vmatpush1.msra.mxu0 0.0
    %869 = vmatprep.subr.mxu0 0.0
    %870 = vmatpush1.msra.mxu0 0.0
    %871 = vmatprep.subr.mxu0 0.0
    %872 = vmatpush1.msra.mxu0 0.0
    %873 = vmatprep.subr.mxu0 0.0
    %874 = vmatpush1.msra.mxu0 0.0
    %875 = vmatprep.subr.mxu0 0.0
    %876 = vmatpush1.msra.mxu0 0.0
    %877 = vmatprep.subr.mxu0 0.0
    %878 = vmatpush1.msra.mxu0 0.0
    %879 = vmatprep.subr.mxu0 0.0
    %880 = vmatpush1.msra.mxu0 0.0
    %881 = vmatprep.subr.mxu0 0.0
    %882 = vmatpush1.msra.mxu0 0.0
    %883 = vmatprep.subr.mxu0 0.0
    %884 = vmatpush1.msra.mxu0 0.0
    %885 = vmatprep.subr.mxu0 0.0
    %886 = vmatpush1.msra.mxu0 0.0
    %887 = vmatprep.subr.mxu0 0.0
    %888 = vmatpush1.msra.mxu0 0.0
    %889 = vmatprep.subr.mxu0 0.0
    %890 = vmatpush1.msra.mxu0 0.0
    %891 = vmatprep.subr.mxu0 0.0
    %892 = vmatpush1.msra.mxu0 0.0
    %893 = vmatprep.subr.mxu0 0.0
    %894 = vmatpush1.msra.mxu0 0.0
    %895 = vmatprep.mubr.f32.mxu0 0.0
    %896 = vmatmul.mubr.f32.gmra.mrb[0].mxu0 %v829
    %v897 = vpop.f32.mrb[0].mxu0
    %v898 = vadd.f32 0.0, %v897
    %v899 = vpop.f32.mrb[0].mxu0
    %v900 = vadd.f32 0.0, %v899
    %901 = vdwg.mxu0
    %902 = vmatprep.subr.mxu0 %v257
    %903 = vmatpush1.msra.mxu0 %v256
    %904 = vmatprep.subr.mxu0 %v261
    %905 = vmatpush1.msra.mxu0 %v260
    %906 = vmatprep.subr.mxu0 %v265
    %907 = vmatpush1.msra.mxu0 %v264
    %908 = vmatprep.subr.mxu0 %v269
    %909 = vmatpush1.msra.mxu0 %v268
    %910 = vmatprep.subr.mxu0 0.0
    %911 = vmatpush1.msra.mxu0 0.0
    %912 = vmatprep.subr.mxu0 0.0
    %913 = vmatpush1.msra.mxu0 0.0
    %914 = vmatprep.subr.mxu0 0.0
    %915 = vmatpush1.msra.mxu0 0.0
    %916 = vmatprep.subr.mxu0 0.0
    %917 = vmatpush1.msra.mxu0 0.0
    %918 = vmatprep.subr.mxu0 0.0
    %919 = vmatpush1.msra.mxu0 0.0
    %920 = vmatprep.subr.mxu0 0.0
    %921 = vmatpush1.msra.mxu0 0.0
    %922 = vmatprep.subr.mxu0 0.0
    %923 = vmatpush1.msra.mxu0 0.0
    %924 = vmatprep.subr.mxu0 0.0
    %925 = vmatpush1.msra.mxu0 0.0
    %926 = vmatprep.subr.mxu0 0.0
    %927 = vmatpush1.msra.mxu0 0.0
    %928 = vmatprep.subr.mxu0 0.0
    %929 = vmatpush1.msra.mxu0 0.0
    %930 = vmatprep.subr.mxu0 0.0
    %931 = vmatpush1.msra.mxu0 0.0
    %932 = vmatprep.subr.mxu0 0.0
    %933 = vmatpush1.msra.mxu0 0.0
    %934 = vmatprep.subr.mxu0 0.0
    %935 = vmatpush1.msra.mxu0 0.0
    %936 = vmatprep.subr.mxu0 0.0
    %937 = vmatpush1.msra.mxu0 0.0
    %938 = vmatprep.subr.mxu0 0.0
    %939 = vmatpush1.msra.mxu0 0.0
    %940 = vmatprep.subr.mxu0 0.0
    %941 = vmatpush1.msra.mxu0 0.0
    %942 = vmatprep.subr.mxu0 0.0
    %943 = vmatpush1.msra.mxu0 0.0
    %944 = vmatprep.subr.mxu0 0.0
    %945 = vmatpush1.msra.mxu0 0.0
    %946 = vmatprep.subr.mxu0 0.0
    %947 = vmatpush1.msra.mxu0 0.0
    %948 = vmatprep.subr.mxu0 0.0
    %949 = vmatpush1.msra.mxu0 0.0
    %950 = vmatprep.subr.mxu0 0.0
    %951 = vmatpush1.msra.mxu0 0.0
    %952 = vmatprep.subr.mxu0 0.0
    %953 = vmatpush1.msra.mxu0 0.0
    %954 = vmatprep.subr.mxu0 0.0
    %955 = vmatpush1.msra.mxu0 0.0
    %956 = vmatprep.subr.mxu0 0.0
    %957 = vmatpush1.msra.mxu0 0.0
    %958 = vmatprep.subr.mxu0 0.0
    %959 = vmatpush1.msra.mxu0 0.0
    %960 = vmatprep.subr.mxu0 0.0
    %961 = vmatpush1.msra.mxu0 0.0
    %962 = vmatprep.subr.mxu0 0.0
    %963 = vmatpush1.msra.mxu0 0.0
    %964 = vmatprep.subr.mxu0 0.0
    %965 = vmatpush1.msra.mxu0 0.0
    %966 = vmatprep.mubr.f32.mxu0 0.0
    %967 = vmatmul.mubr.f32.gmra.mrb[0].mxu0 %v829
    %v968 = vpop.f32.mrb[0].mxu0
    %v969 = vadd.f32 0.0, %v968
    %v970 = vpop.f32.mrb[0].mxu0
    %v971 = vadd.f32 0.0, %v970
    %972 = vdwg.mxu0
    %v977 = vrot.slane %v898, 5
    %v978 = vrot.slane %v900, 5
    %v979 = vrot.slane %v969, 5
    %v980 = vrot.slane %v971, 5
    %v985 = vadd.f32 %v179, %v977
    %v986 = vadd.f32 %v181, %v978
    %v987 = vadd.f32 %v250, %v979
    %v988 = vadd.f32 %v252, %v980
    %v989 = vxor.u32 %v985, 2147483648
    %v990 = vmul.f32 %v989, 1.442695
    %v991 = vpow.pop %v990
    %v992 = vadd.f32 %v991, 1.0
    %v993 = vrcp.pop %v992
    %v994 = vmul.f32 1.0, %v993
    %v995 = vxor.u32 %v986, 2147483648
    %v996 = vmul.f32 %v995, 1.442695
    %v997 = vpow.pop %v996
    %v998 = vadd.f32 %v997, 1.0
    %v999 = vrcp.pop %v998
    %v1000 = vmul.f32 1.0, %v999
    %v1001 = vtanh.pop %v987
    %v1002 = vxor.u32 %v988, 2147483648
    %v1003 = vmul.f32 %v1002, 1.442695
    %v1004 = vpow.pop %v1003
    %v1005 = vadd.f32 %v1004, 1.0
    %v1006 = vrcp.pop %v1005
    %v1007 = vmul.f32 1.0, %v1006
    %v1009 = vrot.slane %v822, 7
    %v1011 = vmul.f32 %v1000, %v1009
    %v1012 = vmul.f32 %v994, %v1001
    %v1013 = vadd.f32 %v1011, %v1012
    %v1014 = vtanh.pop %v1013
    %v1015 = vmul.f32 %v1007, %v1014
    %vm1016 = vcmask 257027
    %1017 = vst.msk [vmem:[#allocation2] sm:$0x8] %vm1016, %v1015
    %v1019 = vrot.slane %v1015, 3
    %v1020 = vsel %vm270, %v1019, 0
    %1022 = vmatprep.subr.mxu0 %v255
    %1023 = vmatpush1.msra.mxu0 %v254
    %1024 = vmatprep.subr.mxu0 %v259
    %1025 = vmatpush1.msra.mxu0 %v258
    %1026 = vmatprep.subr.mxu0 %v263
    %1027 = vmatpush1.msra.mxu0 %v262
    %1028 = vmatprep.subr.mxu0 %v267
    %1029 = vmatpush1.msra.mxu0 %v266
    %1030 = vmatprep.subr.mxu0 0.0
    %1031 = vmatpush1.msra.mxu0 0.0
    %1032 = vmatprep.subr.mxu0 0.0
    %1033 = vmatpush1.msra.mxu0 0.0
    %1034 = vmatprep.subr.mxu0 0.0
    %1035 = vmatpush1.msra.mxu0 0.0
    %1036 = vmatprep.subr.mxu0 0.0
    %1037 = vmatpush1.msra.mxu0 0.0
    %1038 = vmatprep.subr.mxu0 0.0
    %1039 = vmatpush1.msra.mxu0 0.0
    %1040 = vmatprep.subr.mxu0 0.0
    %1041 = vmatpush1.msra.mxu0 0.0
    %1042 = vmatprep.subr.mxu0 0.0
    %1043 = vmatpush1.msra.mxu0 0.0
    %1044 = vmatprep.subr.mxu0 0.0
    %1045 = vmatpush1.msra.mxu0 0.0
    %1046 = vmatprep.subr.mxu0 0.0
    %1047 = vmatpush1.msra.mxu0 0.0
    %1048 = vmatprep.subr.mxu0 0.0
    %1049 = vmatpush1.msra.mxu0 0.0
    %1050 = vmatprep.subr.mxu0 0.0
    %1051 = vmatpush1.msra.mxu0 0.0
    %1052 = vmatprep.subr.mxu0 0.0
    %1053 = vmatpush1.msra.mxu0 0.0
    %1054 = vmatprep.subr.mxu0 0.0
    %1055 = vmatpush1.msra.mxu0 0.0
    %1056 = vmatprep.subr.mxu0 0.0
    %1057 = vmatpush1.msra.mxu0 0.0
    %1058 = vmatprep.subr.mxu0 0.0
    %1059 = vmatpush1.msra.mxu0 0.0
    %1060 = vmatprep.subr.mxu0 0.0
    %1061 = vmatpush1.msra.mxu0 0.0
    %1062 = vmatprep.subr.mxu0 0.0
    %1063 = vmatpush1.msra.mxu0 0.0
    %1064 = vmatprep.subr.mxu0 0.0
    %1065 = vmatpush1.msra.mxu0 0.0
    %1066 = vmatprep.subr.mxu0 0.0
    %1067 = vmatpush1.msra.mxu0 0.0
    %1068 = vmatprep.subr.mxu0 0.0
    %1069 = vmatpush1.msra.mxu0 0.0
    %1070 = vmatprep.subr.mxu0 0.0
    %1071 = vmatpush1.msra.mxu0 0.0
    %1072 = vmatprep.subr.mxu0 0.0
    %1073 = vmatpush1.msra.mxu0 0.0
    %1074 = vmatprep.subr.mxu0 0.0
    %1075 = vmatpush1.msra.mxu0 0.0
    %1076 = vmatprep.subr.mxu0 0.0
    %1077 = vmatpush1.msra.mxu0 0.0
    %1078 = vmatprep.subr.mxu0 0.0
    %1079 = vmatpush1.msra.mxu0 0.0
    %1080 = vmatprep.subr.mxu0 0.0
    %1081 = vmatpush1.msra.mxu0 0.0
    %1082 = vmatprep.subr.mxu0 0.0
    %1083 = vmatpush1.msra.mxu0 0.0
    %1084 = vmatprep.subr.mxu0 0.0
    %1085 = vmatpush1.msra.mxu0 0.0
    %1086 = vmatprep.mubr.f32.mxu0 0.0
    %1087 = vmatmul.mubr.f32.gmra.mrb[0].mxu0 %v1020
    %v1088 = vpop.f32.mrb[0].mxu0
    %v1089 = vadd.f32 0.0, %v1088
    %v1090 = vpop.f32.mrb[0].mxu0
    %v1091 = vadd.f32 0.0, %v1090
    %1092 = vdwg.mxu0
    %1093 = vmatprep.subr.mxu0 %v257
    %1094 = vmatpush1.msra.mxu0 %v256
    %1095 = vmatprep.subr.mxu0 %v261
    %1096 = vmatpush1.msra.mxu0 %v260
    %1097 = vmatprep.subr.mxu0 %v265
    %1098 = vmatpush1.msra.mxu0 %v264
    %1099 = vmatprep.subr.mxu0 %v269
    %1100 = vmatpush1.msra.mxu0 %v268
    %1101 = vmatprep.subr.mxu0 0.0
    %1102 = vmatpush1.msra.mxu0 0.0
    %1103 = vmatprep.subr.mxu0 0.0
    %1104 = vmatpush1.msra.mxu0 0.0
    %1105 = vmatprep.subr.mxu0 0.0
    %1106 = vmatpush1.msra.mxu0 0.0
    %1107 = vmatprep.subr.mxu0 0.0
    %1108 = vmatpush1.msra.mxu0 0.0
    %1109 = vmatprep.subr.mxu0 0.0
    %1110 = vmatpush1.msra.mxu0 0.0
    %1111 = vmatprep.subr.mxu0 0.0
    %1112 = vmatpush1.msra.mxu0 0.0
    %1113 = vmatprep.subr.mxu0 0.0
    %1114 = vmatpush1.msra.mxu0 0.0
    %1115 = vmatprep.subr.mxu0 0.0
    %1116 = vmatpush1.msra.mxu0 0.0
    %1117 = vmatprep.subr.mxu0 0.0
    %1118 = vmatpush1.msra.mxu0 0.0
    %1119 = vmatprep.subr.mxu0 0.0
    %1120 = vmatpush1.msra.mxu0 0.0
    %1121 = vmatprep.subr.mxu0 0.0
    %1122 = vmatpush1.msra.mxu0 0.0
    %1123 = vmatprep.subr.mxu0 0.0
    %1124 = vmatpush1.msra.mxu0 0.0
    %1125 = vmatprep.subr.mxu0 0.0
    %1126 = vmatpush1.msra.mxu0 0.0
    %1127 = vmatprep.subr.mxu0 0.0
    %1128 = vmatpush1.msra.mxu0 0.0
    %1129 = vmatprep.subr.mxu0 0.0
    %1130 = vmatpush1.msra.mxu0 0.0
    %1131 = vmatprep.subr.mxu0 0.0
    %1132 = vmatpush1.msra.mxu0 0.0
    %1133 = vmatprep.subr.mxu0 0.0
    %1134 = vmatpush1.msra.mxu0 0.0
    %1135 = vmatprep.subr.mxu0 0.0
    %1136 = vmatpush1.msra.mxu0 0.0
    %1137 = vmatprep.subr.mxu0 0.0
    %1138 = vmatpush1.msra.mxu0 0.0
    %1139 = vmatprep.subr.mxu0 0.0
    %1140 = vmatpush1.msra.mxu0 0.0
    %1141 = vmatprep.subr.mxu0 0.0
    %1142 = vmatpush1.msra.mxu0 0.0
    %1143 = vmatprep.subr.mxu0 0.0
    %1144 = vmatpush1.msra.mxu0 0.0
    %1145 = vmatprep.subr.mxu0 0.0
    %1146 = vmatpush1.msra.mxu0 0.0
    %1147 = vmatprep.subr.mxu0 0.0
    %1148 = vmatpush1.msra.mxu0 0.0
    %1149 = vmatprep.subr.mxu0 0.0
    %1150 = vmatpush1.msra.mxu0 0.0
    %1151 = vmatprep.subr.mxu0 0.0
    %1152 = vmatpush1.msra.mxu0 0.0
    %1153 = vmatprep.subr.mxu0 0.0
    %1154 = vmatpush1.msra.mxu0 0.0
    %1155 = vmatprep.subr.mxu0 0.0
    %1156 = vmatpush1.msra.mxu0 0.0
    %1157 = vmatprep.mubr.f32.mxu0 0.0
    %1158 = vmatmul.mubr.f32.gmra.mrb[0].mxu0 %v1020
    %v1159 = vpop.f32.mrb[0].mxu0
    %v1160 = vadd.f32 0.0, %v1159
    %v1161 = vpop.f32.mrb[0].mxu0
    %v1162 = vadd.f32 0.0, %v1161
    %1163 = vdwg.mxu0
    %v1168 = vrot.slane %v1089, 4
    %v1169 = vrot.slane %v1091, 4
    %v1170 = vrot.slane %v1160, 4
    %v1171 = vrot.slane %v1162, 4
    %v1176 = vadd.f32 %v179, %v1168
    %v1177 = vadd.f32 %v181, %v1169
    %v1178 = vadd.f32 %v250, %v1170
    %v1179 = vadd.f32 %v252, %v1171
    %v1180 = vxor.u32 %v1176, 2147483648
    %v1181 = vmul.f32 %v1180, 1.442695
    %v1182 = vpow.pop %v1181
    %v1183 = vadd.f32 %v1182, 1.0
    %v1184 = vrcp.pop %v1183
    %v1185 = vmul.f32 1.0, %v1184
    %v1186 = vxor.u32 %v1177, 2147483648
    %v1187 = vmul.f32 %v1186, 1.442695
    %v1188 = vpow.pop %v1187
    %v1189 = vadd.f32 %v1188, 1.0
    %v1190 = vrcp.pop %v1189
    %v1191 = vmul.f32 1.0, %v1190
    %v1192 = vtanh.pop %v1178
    %v1193 = vxor.u32 %v1179, 2147483648
    %v1194 = vmul.f32 %v1193, 1.442695
    %v1195 = vpow.pop %v1194
    %v1196 = vadd.f32 %v1195, 1.0
    %v1197 = vrcp.pop %v1196
    %v1198 = vmul.f32 1.0, %v1197
    %v1200 = vrot.slane %v1013, 7
    %v1202 = vmul.f32 %v1191, %v1200
    %v1203 = vmul.f32 %v1185, %v1192
    %v1204 = vadd.f32 %v1202, %v1203
    %v1205 = vtanh.pop %v1204
    %v1206 = vmul.f32 %v1198, %v1205
    %vm1207 = vcmask 258052
    %1208 = vst.msk [vmem:[#allocation2] sm:$0x10] %vm1207, %v1206
    %v1210 = vrot.slane %v1206, 4
    %v1211 = vsel %vm270, %v1210, 0
    %1213 = vmatprep.subr.mxu0 %v255
    %1214 = vmatpush1.msra.mxu0 %v254
    %1215 = vmatprep.subr.mxu0 %v259
    %1216 = vmatpush1.msra.mxu0 %v258
    %1217 = vmatprep.subr.mxu0 %v263
    %1218 = vmatpush1.msra.mxu0 %v262
    %1219 = vmatprep.subr.mxu0 %v267
    %1220 = vmatpush1.msra.mxu0 %v266
    %1221 = vmatprep.subr.mxu0 0.0
    %1222 = vmatpush1.msra.mxu0 0.0
    %1223 = vmatprep.subr.mxu0 0.0
    %1224 = vmatpush1.msra.mxu0 0.0
    %1225 = vmatprep.subr.mxu0 0.0
    %1226 = vmatpush1.msra.mxu0 0.0
    %1227 = vmatprep.subr.mxu0 0.0
    %1228 = vmatpush1.msra.mxu0 0.0
    %1229 = vmatprep.subr.mxu0 0.0
    %1230 = vmatpush1.msra.mxu0 0.0
    %1231 = vmatprep.subr.mxu0 0.0
    %1232 = vmatpush1.msra.mxu0 0.0
    %1233 = vmatprep.subr.mxu0 0.0
    %1234 = vmatpush1.msra.mxu0 0.0
    %1235 = vmatprep.subr.mxu0 0.0
    %1236 = vmatpush1.msra.mxu0 0.0
    %1237 = vmatprep.subr.mxu0 0.0
    %1238 = vmatpush1.msra.mxu0 0.0
    %1239 = vmatprep.subr.mxu0 0.0
    %1240 = vmatpush1.msra.mxu0 0.0
    %1241 = vmatprep.subr.mxu0 0.0
    %1242 = vmatpush1.msra.mxu0 0.0
    %1243 = vmatprep.subr.mxu0 0.0
    %1244 = vmatpush1.msra.mxu0 0.0
    %1245 = vmatprep.subr.mxu0 0.0
    %1246 = vmatpush1.msra.mxu0 0.0
    %1247 = vmatprep.subr.mxu0 0.0
    %1248 = vmatpush1.msra.mxu0 0.0
    %1249 = vmatprep.subr.mxu0 0.0
    %1250 = vmatpush1.msra.mxu0 0.0
    %1251 = vmatprep.subr.mxu0 0.0
    %1252 = vmatpush1.msra.mxu0 0.0
    %1253 = vmatprep.subr.mxu0 0.0
    %1254 = vmatpush1.msra.mxu0 0.0
    %1255 = vmatprep.subr.mxu0 0.0
    %1256 = vmatpush1.msra.mxu0 0.0
    %1257 = vmatprep.subr.mxu0 0.0
    %1258 = vmatpush1.msra.mxu0 0.0
    %1259 = vmatprep.subr.mxu0 0.0
    %1260 = vmatpush1.msra.mxu0 0.0
    %1261 = vmatprep.subr.mxu0 0.0
    %1262 = vmatpush1.msra.mxu0 0.0
    %1263 = vmatprep.subr.mxu0 0.0
    %1264 = vmatpush1.msra.mxu0 0.0
    %1265 = vmatprep.subr.mxu0 0.0
    %1266 = vmatpush1.msra.mxu0 0.0
    %1267 = vmatprep.subr.mxu0 0.0
    %1268 = vmatpush1.msra.mxu0 0.0
    %1269 = vmatprep.subr.mxu0 0.0
    %1270 = vmatpush1.msra.mxu0 0.0
    %1271 = vmatprep.subr.mxu0 0.0
    %1272 = vmatpush1.msra.mxu0 0.0
    %1273 = vmatprep.subr.mxu0 0.0
    %1274 = vmatpush1.msra.mxu0 0.0
    %1275 = vmatprep.subr.mxu0 0.0
    %1276 = vmatpush1.msra.mxu0 0.0
    %1277 = vmatprep.mubr.f32.mxu0 0.0
    %1278 = vmatmul.mubr.f32.gmra.mrb[0].mxu0 %v1211
    %v1279 = vpop.f32.mrb[0].mxu0
    %v1280 = vadd.f32 0.0, %v1279
    %v1281 = vpop.f32.mrb[0].mxu0
    %v1282 = vadd.f32 0.0, %v1281
    %1283 = vdwg.mxu0
    %1284 = vmatprep.subr.mxu0 %v257
    %1285 = vmatpush1.msra.mxu0 %v256
    %1286 = vmatprep.subr.mxu0 %v261
    %1287 = vmatpush1.msra.mxu0 %v260
    %1288 = vmatprep.subr.mxu0 %v265
    %1289 = vmatpush1.msra.mxu0 %v264
    %1290 = vmatprep.subr.mxu0 %v269
    %1291 = vmatpush1.msra.mxu0 %v268
    %1292 = vmatprep.subr.mxu0 0.0
    %1293 = vmatpush1.msra.mxu0 0.0
    %1294 = vmatprep.subr.mxu0 0.0
    %1295 = vmatpush1.msra.mxu0 0.0
    %1296 = vmatprep.subr.mxu0 0.0
    %1297 = vmatpush1.msra.mxu0 0.0
    %1298 = vmatprep.subr.mxu0 0.0
    %1299 = vmatpush1.msra.mxu0 0.0
    %1300 = vmatprep.subr.mxu0 0.0
    %1301 = vmatpush1.msra.mxu0 0.0
    %1302 = vmatprep.subr.mxu0 0.0
    %1303 = vmatpush1.msra.mxu0 0.0
    %1304 = vmatprep.subr.mxu0 0.0
    %1305 = vmatpush1.msra.mxu0 0.0
    %1306 = vmatprep.subr.mxu0 0.0
    %1307 = vmatpush1.msra.mxu0 0.0
    %1308 = vmatprep.subr.mxu0 0.0
    %1309 = vmatpush1.msra.mxu0 0.0
    %1310 = vmatprep.subr.mxu0 0.0
    %1311 = vmatpush1.msra.mxu0 0.0
    %1312 = vmatprep.subr.mxu0 0.0
    %1313 = vmatpush1.msra.mxu0 0.0
    %1314 = vmatprep.subr.mxu0 0.0
    %1315 = vmatpush1.msra.mxu0 0.0
    %1316 = vmatprep.subr.mxu0 0.0
    %1317 = vmatpush1.msra.mxu0 0.0
    %1318 = vmatprep.subr.mxu0 0.0
    %1319 = vmatpush1.msra.mxu0 0.0
    %1320 = vmatprep.subr.mxu0 0.0
    %1321 = vmatpush1.msra.mxu0 0.0
    %1322 = vmatprep.subr.mxu0 0.0
    %1323 = vmatpush1.msra.mxu0 0.0
    %1324 = vmatprep.subr.mxu0 0.0
    %1325 = vmatpush1.msra.mxu0 0.0
    %1326 = vmatprep.subr.mxu0 0.0
    %1327 = vmatpush1.msra.mxu0 0.0
    %1328 = vmatprep.subr.mxu0 0.0
    %1329 = vmatpush1.msra.mxu0 0.0
    %1330 = vmatprep.subr.mxu0 0.0
    %1331 = vmatpush1.msra.mxu0 0.0
    %1332 = vmatprep.subr.mxu0 0.0
    %1333 = vmatpush1.msra.mxu0 0.0
    %1334 = vmatprep.subr.mxu0 0.0
    %1335 = vmatpush1.msra.mxu0 0.0
    %1336 = vmatprep.subr.mxu0 0.0
    %1337 = vmatpush1.msra.mxu0 0.0
    %1338 = vmatprep.subr.mxu0 0.0
    %1339 = vmatpush1.msra.mxu0 0.0
    %1340 = vmatprep.subr.mxu0 0.0
    %1341 = vmatpush1.msra.mxu0 0.0
    %1342 = vmatprep.subr.mxu0 0.0
    %1343 = vmatpush1.msra.mxu0 0.0
    %1344 = vmatprep.subr.mxu0 0.0
    %1345 = vmatpush1.msra.mxu0 0.0
    %1346 = vmatprep.subr.mxu0 0.0
    %1347 = vmatpush1.msra.mxu0 0.0
    %1348 = vmatprep.mubr.f32.mxu0 0.0
    %1349 = vmatmul.mubr.f32.gmra.mrb[0].mxu0 %v1211
    %v1350 = vpop.f32.mrb[0].mxu0
    %v1351 = vadd.f32 0.0, %v1350
    %v1352 = vpop.f32.mrb[0].mxu0
    %v1353 = vadd.f32 0.0, %v1352
    %1354 = vdwg.mxu0
    %v1359 = vrot.slane %v1280, 3
    %v1360 = vrot.slane %v1282, 3
    %v1361 = vrot.slane %v1351, 3
    %v1362 = vrot.slane %v1353, 3
    %v1367 = vadd.f32 %v179, %v1359
    %v1368 = vadd.f32 %v181, %v1360
    %v1369 = vadd.f32 %v250, %v1361
    %v1370 = vadd.f32 %v252, %v1362
    %v1371 = vxor.u32 %v1367, 2147483648
    %v1372 = vmul.f32 %v1371, 1.442695
    %v1373 = vpow.pop %v1372
    %v1374 = vadd.f32 %v1373, 1.0
    %v1375 = vrcp.pop %v1374
    %v1376 = vmul.f32 1.0, %v1375
    %v1377 = vxor.u32 %v1368, 2147483648
    %v1378 = vmul.f32 %v1377, 1.442695
    %v1379 = vpow.pop %v1378
    %v1380 = vadd.f32 %v1379, 1.0
    %v1381 = vrcp.pop %v1380
    %v1382 = vmul.f32 1.0, %v1381
    %v1383 = vtanh.pop %v1369
    %v1384 = vxor.u32 %v1370, 2147483648
    %v1385 = vmul.f32 %v1384, 1.442695
    %v1386 = vpow.pop %v1385
    %v1387 = vadd.f32 %v1386, 1.0
    %v1388 = vrcp.pop %v1387
    %v1389 = vmul.f32 1.0, %v1388
    %v1391 = vrot.slane %v1204, 7
    %v1393 = vmul.f32 %v1382, %v1391
    %v1394 = vmul.f32 %v1376, %v1383
    %v1395 = vadd.f32 %v1393, %v1394
    %v1396 = vtanh.pop %v1395
    %v1397 = vmul.f32 %v1389, %v1396
    %vm1398 = vcmask 259077
    %1399 = vst.msk [vmem:[#allocation2] sm:$0x20] %vm1398, %v1397
    %v1401 = vrot.slane %v1397, 5
    %v1402 = vsel %vm270, %v1401, 0
    %1404 = vmatprep.subr.mxu0 %v255
    %1405 = vmatpush1.msra.mxu0 %v254
    %1406 = vmatprep.subr.mxu0 %v259
    %1407 = vmatpush1.msra.mxu0 %v258
    %1408 = vmatprep.subr.mxu0 %v263
    %1409 = vmatpush1.msra.mxu0 %v262
    %1410 = vmatprep.subr.mxu0 %v267
    %1411 = vmatpush1.msra.mxu0 %v266
    %1412 = vmatprep.subr.mxu0 0.0
    %1413 = vmatpush1.msra.mxu0 0.0
    %1414 = vmatprep.subr.mxu0 0.0
    %1415 = vmatpush1.msra.mxu0 0.0
    %1416 = vmatprep.subr.mxu0 0.0
    %1417 = vmatpush1.msra.mxu0 0.0
    %1418 = vmatprep.subr.mxu0 0.0
    %1419 = vmatpush1.msra.mxu0 0.0
    %1420 = vmatprep.subr.mxu0 0.0
    %1421 = vmatpush1.msra.mxu0 0.0
    %1422 = vmatprep.subr.mxu0 0.0
    %1423 = vmatpush1.msra.mxu0 0.0
    %1424 = vmatprep.subr.mxu0 0.0
    %1425 = vmatpush1.msra.mxu0 0.0
    %1426 = vmatprep.subr.mxu0 0.0
    %1427 = vmatpush1.msra.mxu0 0.0
    %1428 = vmatprep.subr.mxu0 0.0
    %1429 = vmatpush1.msra.mxu0 0.0
    %1430 = vmatprep.subr.mxu0 0.0
    %1431 = vmatpush1.msra.mxu0 0.0
    %1432 = vmatprep.subr.mxu0 0.0
    %1433 = vmatpush1.msra.mxu0 0.0
    %1434 = vmatprep.subr.mxu0 0.0
    %1435 = vmatpush1.msra.mxu0 0.0
    %1436 = vmatprep.subr.mxu0 0.0
    %1437 = vmatpush1.msra.mxu0 0.0
    %1438 = vmatprep.subr.mxu0 0.0
    %1439 = vmatpush1.msra.mxu0 0.0
    %1440 = vmatprep.subr.mxu0 0.0
    %1441 = vmatpush1.msra.mxu0 0.0
    %1442 = vmatprep.subr.mxu0 0.0
    %1443 = vmatpush1.msra.mxu0 0.0
    %1444 = vmatprep.subr.mxu0 0.0
    %1445 = vmatpush1.msra.mxu0 0.0
    %1446 = vmatprep.subr.mxu0 0.0
    %1447 = vmatpush1.msra.mxu0 0.0
    %1448 = vmatprep.subr.mxu0 0.0
    %1449 = vmatpush1.msra.mxu0 0.0
    %1450 = vmatprep.subr.mxu0 0.0
    %1451 = vmatpush1.msra.mxu0 0.0
    %1452 = vmatprep.subr.mxu0 0.0
    %1453 = vmatpush1.msra.mxu0 0.0
    %1454 = vmatprep.subr.mxu0 0.0
    %1455 = vmatpush1.msra.mxu0 0.0
    %1456 = vmatprep.subr.mxu0 0.0
    %1457 = vmatpush1.msra.mxu0 0.0
    %1458 = vmatprep.subr.mxu0 0.0
    %1459 = vmatpush1.msra.mxu0 0.0
    %1460 = vmatprep.subr.mxu0 0.0
    %1461 = vmatpush1.msra.mxu0 0.0
    %1462 = vmatprep.subr.mxu0 0.0
    %1463 = vmatpush1.msra.mxu0 0.0
    %1464 = vmatprep.subr.mxu0 0.0
    %1465 = vmatpush1.msra.mxu0 0.0
    %1466 = vmatprep.subr.mxu0 0.0
    %1467 = vmatpush1.msra.mxu0 0.0
    %1468 = vmatprep.mubr.f32.mxu0 0.0
    %1469 = vmatmul.mubr.f32.gmra.mrb[0].mxu0 %v1402
    %v1470 = vpop.f32.mrb[0].mxu0
    %v1471 = vadd.f32 0.0, %v1470
    %v1472 = vpop.f32.mrb[0].mxu0
    %v1473 = vadd.f32 0.0, %v1472
    %1474 = vdwg.mxu0
    %1475 = vmatprep.subr.mxu0 %v257
    %1476 = vmatpush1.msra.mxu0 %v256
    %1477 = vmatprep.subr.mxu0 %v261
    %1478 = vmatpush1.msra.mxu0 %v260
    %1479 = vmatprep.subr.mxu0 %v265
    %1480 = vmatpush1.msra.mxu0 %v264
    %1481 = vmatprep.subr.mxu0 %v269
    %1482 = vmatpush1.msra.mxu0 %v268
    %1483 = vmatprep.subr.mxu0 0.0
    %1484 = vmatpush1.msra.mxu0 0.0
    %1485 = vmatprep.subr.mxu0 0.0
    %1486 = vmatpush1.msra.mxu0 0.0
    %1487 = vmatprep.subr.mxu0 0.0
    %1488 = vmatpush1.msra.mxu0 0.0
    %1489 = vmatprep.subr.mxu0 0.0
    %1490 = vmatpush1.msra.mxu0 0.0
    %1491 = vmatprep.subr.mxu0 0.0
    %1492 = vmatpush1.msra.mxu0 0.0
    %1493 = vmatprep.subr.mxu0 0.0
    %1494 = vmatpush1.msra.mxu0 0.0
    %1495 = vmatprep.subr.mxu0 0.0
    %1496 = vmatpush1.msra.mxu0 0.0
    %1497 = vmatprep.subr.mxu0 0.0
    %1498 = vmatpush1.msra.mxu0 0.0
    %1499 = vmatprep.subr.mxu0 0.0
    %1500 = vmatpush1.msra.mxu0 0.0
    %1501 = vmatprep.subr.mxu0 0.0
    %1502 = vmatpush1.msra.mxu0 0.0
    %1503 = vmatprep.subr.mxu0 0.0
    %1504 = vmatpush1.msra.mxu0 0.0
    %1505 = vmatprep.subr.mxu0 0.0
    %1506 = vmatpush1.msra.mxu0 0.0
    %1507 = vmatprep.subr.mxu0 0.0
    %1508 = vmatpush1.msra.mxu0 0.0
    %1509 = vmatprep.subr.mxu0 0.0
    %1510 = vmatpush1.msra.mxu0 0.0
    %1511 = vmatprep.subr.mxu0 0.0
    %1512 = vmatpush1.msra.mxu0 0.0
    %1513 = vmatprep.subr.mxu0 0.0
    %1514 = vmatpush1.msra.mxu0 0.0
    %1515 = vmatprep.subr.mxu0 0.0
    %1516 = vmatpush1.msra.mxu0 0.0
    %1517 = vmatprep.subr.mxu0 0.0
    %1518 = vmatpush1.msra.mxu0 0.0
    %1519 = vmatprep.subr.mxu0 0.0
    %1520 = vmatpush1.msra.mxu0 0.0
    %1521 = vmatprep.subr.mxu0 0.0
    %1522 = vmatpush1.msra.mxu0 0.0
    %1523 = vmatprep.subr.mxu0 0.0
    %1524 = vmatpush1.msra.mxu0 0.0
    %1525 = vmatprep.subr.mxu0 0.0
    %1526 = vmatpush1.msra.mxu0 0.0
    %1527 = vmatprep.subr.mxu0 0.0
    %1528 = vmatpush1.msra.mxu0 0.0
    %1529 = vmatprep.subr.mxu0 0.0
    %1530 = vmatpush1.msra.mxu0 0.0
    %1531 = vmatprep.subr.mxu0 0.0
    %1532 = vmatpush1.msra.mxu0 0.0
    %1533 = vmatprep.subr.mxu0 0.0
    %1534 = vmatpush1.msra.mxu0 0.0
    %1535 = vmatprep.subr.mxu0 0.0
    %1536 = vmatpush1.msra.mxu0 0.0
    %1537 = vmatprep.subr.mxu0 0.0
    %1538 = vmatpush1.msra.mxu0 0.0
    %1539 = vmatprep.mubr.f32.mxu0 0.0
    %1540 = vmatmul.mubr.f32.gmra.mrb[0].mxu0 %v1402
    %v1541 = vpop.f32.mrb[0].mxu0
    %v1542 = vadd.f32 0.0, %v1541
    %v1543 = vpop.f32.mrb[0].mxu0
    %v1544 = vadd.f32 0.0, %v1543
    %1545 = vdwg.mxu0
    %v1550 = vrot.slane %v1471, 2
    %v1551 = vrot.slane %v1473, 2
    %v1552 = vrot.slane %v1542, 2
    %v1553 = vrot.slane %v1544, 2
    %v1558 = vadd.f32 %v179, %v1550
    %v1559 = vadd.f32 %v181, %v1551
    %v1560 = vadd.f32 %v250, %v1552
    %v1561 = vadd.f32 %v252, %v1553
    %v1562 = vxor.u32 %v1558, 2147483648
    %v1563 = vmul.f32 %v1562, 1.442695
    %v1564 = vpow.pop %v1563
    %v1565 = vadd.f32 %v1564, 1.0
    %v1566 = vrcp.pop %v1565
    %v1567 = vmul.f32 1.0, %v1566
    %v1568 = vxor.u32 %v1559, 2147483648
    %v1569 = vmul.f32 %v1568, 1.442695
    %v1570 = vpow.pop %v1569
    %v1571 = vadd.f32 %v1570, 1.0
    %v1572 = vrcp.pop %v1571
    %v1573 = vmul.f32 1.0, %v1572
    %v1574 = vtanh.pop %v1560
    %v1575 = vxor.u32 %v1561, 2147483648
    %v1576 = vmul.f32 %v1575, 1.442695
    %v1577 = vpow.pop %v1576
    %v1578 = vadd.f32 %v1577, 1.0
    %v1579 = vrcp.pop %v1578
    %v1580 = vmul.f32 1.0, %v1579
    %v1582 = vrot.slane %v1395, 7
    %v1584 = vmul.f32 %v1573, %v1582
    %v1585 = vmul.f32 %v1567, %v1574
    %v1586 = vadd.f32 %v1584, %v1585
    %v1587 = vtanh.pop %v1586
    %v1588 = vmul.f32 %v1580, %v1587
    %vm1589 = vcmask 260102
    %1590 = vst.msk [vmem:[#allocation2] sm:$0x40] %vm1589, %v1588
    %v1592 = vrot.slane %v1588, 6
    %v1593 = vsel %vm270, %v1592, 0
    %1595 = vmatprep.subr.mxu0 %v255
    %1596 = vmatpush1.msra.mxu0 %v254
    %1597 = vmatprep.subr.mxu0 %v259
    %1598 = vmatpush1.msra.mxu0 %v258
    %1599 = vmatprep.subr.mxu0 %v263
    %1600 = vmatpush1.msra.mxu0 %v262
    %1601 = vmatprep.subr.mxu0 %v267
    %1602 = vmatpush1.msra.mxu0 %v266
    %1603 = vmatprep.subr.mxu0 0.0
    %1604 = vmatpush1.msra.mxu0 0.0
    %1605 = vmatprep.subr.mxu0 0.0
    %1606 = vmatpush1.msra.mxu0 0.0
    %1607 = vmatprep.subr.mxu0 0.0
    %1608 = vmatpush1.msra.mxu0 0.0
    %1609 = vmatprep.subr.mxu0 0.0
    %1610 = vmatpush1.msra.mxu0 0.0
    %1611 = vmatprep.subr.mxu0 0.0
    %1612 = vmatpush1.msra.mxu0 0.0
    %1613 = vmatprep.subr.mxu0 0.0
    %1614 = vmatpush1.msra.mxu0 0.0
    %1615 = vmatprep.subr.mxu0 0.0
    %1616 = vmatpush1.msra.mxu0 0.0
    %1617 = vmatprep.subr.mxu0 0.0
    %1618 = vmatpush1.msra.mxu0 0.0
    %1619 = vmatprep.subr.mxu0 0.0
    %1620 = vmatpush1.msra.mxu0 0.0
    %1621 = vmatprep.subr.mxu0 0.0
    %1622 = vmatpush1.msra.mxu0 0.0
    %1623 = vmatprep.subr.mxu0 0.0
    %1624 = vmatpush1.msra.mxu0 0.0
    %1625 = vmatprep.subr.mxu0 0.0
    %1626 = vmatpush1.msra.mxu0 0.0
    %1627 = vmatprep.subr.mxu0 0.0
    %1628 = vmatpush1.msra.mxu0 0.0
    %1629 = vmatprep.subr.mxu0 0.0
    %1630 = vmatpush1.msra.mxu0 0.0
    %1631 = vmatprep.subr.mxu0 0.0
    %1632 = vmatpush1.msra.mxu0 0.0
    %1633 = vmatprep.subr.mxu0 0.0
    %1634 = vmatpush1.msra.mxu0 0.0
    %1635 = vmatprep.subr.mxu0 0.0
    %1636 = vmatpush1.msra.mxu0 0.0
    %1637 = vmatprep.subr.mxu0 0.0
    %1638 = vmatpush1.msra.mxu0 0.0
    %1639 = vmatprep.subr.mxu0 0.0
    %1640 = vmatpush1.msra.mxu0 0.0
    %1641 = vmatprep.subr.mxu0 0.0
    %1642 = vmatpush1.msra.mxu0 0.0
    %1643 = vmatprep.subr.mxu0 0.0
    %1644 = vmatpush1.msra.mxu0 0.0
    %1645 = vmatprep.subr.mxu0 0.0
    %1646 = vmatpush1.msra.mxu0 0.0
    %1647 = vmatprep.subr.mxu0 0.0
    %1648 = vmatpush1.msra.mxu0 0.0
    %1649 = vmatprep.subr.mxu0 0.0
    %1650 = vmatpush1.msra.mxu0 0.0
    %1651 = vmatprep.subr.mxu0 0.0
    %1652 = vmatpush1.msra.mxu0 0.0
    %1653 = vmatprep.subr.mxu0 0.0
    %1654 = vmatpush1.msra.mxu0 0.0
    %1655 = vmatprep.subr.mxu0 0.0
    %1656 = vmatpush1.msra.mxu0 0.0
    %1657 = vmatprep.subr.mxu0 0.0
    %1658 = vmatpush1.msra.mxu0 0.0
    %1659 = vmatprep.mubr.f32.mxu0 0.0
    %1660 = vmatmul.mubr.f32.gmra.mrb[0].mxu0 %v1593
    %v1661 = vpop.f32.mrb[0].mxu0
    %v1662 = vadd.f32 0.0, %v1661
    %v1663 = vpop.f32.mrb[0].mxu0
    %v1664 = vadd.f32 0.0, %v1663
    %1665 = vdwg.mxu0
    %1666 = vmatprep.subr.mxu0 %v257
    %1667 = vmatpush1.msra.mxu0 %v256
    %1668 = vmatprep.subr.mxu0 %v261
    %1669 = vmatpush1.msra.mxu0 %v260
    %1670 = vmatprep.subr.mxu0 %v265
    %1671 = vmatpush1.msra.mxu0 %v264
    %1672 = vmatprep.subr.mxu0 %v269
    %1673 = vmatpush1.msra.mxu0 %v268
    %1674 = vmatprep.subr.mxu0 0.0
    %1675 = vmatpush1.msra.mxu0 0.0
    %1676 = vmatprep.subr.mxu0 0.0
    %1677 = vmatpush1.msra.mxu0 0.0
    %1678 = vmatprep.subr.mxu0 0.0
    %1679 = vmatpush1.msra.mxu0 0.0
    %1680 = vmatprep.subr.mxu0 0.0
    %1681 = vmatpush1.msra.mxu0 0.0
    %1682 = vmatprep.subr.mxu0 0.0
    %1683 = vmatpush1.msra.mxu0 0.0
    %1684 = vmatprep.subr.mxu0 0.0
    %1685 = vmatpush1.msra.mxu0 0.0
    %1686 = vmatprep.subr.mxu0 0.0
    %1687 = vmatpush1.msra.mxu0 0.0
    %1688 = vmatprep.subr.mxu0 0.0
    %1689 = vmatpush1.msra.mxu0 0.0
    %1690 = vmatprep.subr.mxu0 0.0
    %1691 = vmatpush1.msra.mxu0 0.0
    %1692 = vmatprep.subr.mxu0 0.0
    %1693 = vmatpush1.msra.mxu0 0.0
    %1694 = vmatprep.subr.mxu0 0.0
    %1695 = vmatpush1.msra.mxu0 0.0
    %1696 = vmatprep.subr.mxu0 0.0
    %1697 = vmatpush1.msra.mxu0 0.0
    %1698 = vmatprep.subr.mxu0 0.0
    %1699 = vmatpush1.msra.mxu0 0.0
    %1700 = vmatprep.subr.mxu0 0.0
    %1701 = vmatpush1.msra.mxu0 0.0
    %1702 = vmatprep.subr.mxu0 0.0
    %1703 = vmatpush1.msra.mxu0 0.0
    %1704 = vmatprep.subr.mxu0 0.0
    %1705 = vmatpush1.msra.mxu0 0.0
    %1706 = vmatprep.subr.mxu0 0.0
    %1707 = vmatpush1.msra.mxu0 0.0
    %1708 = vmatprep.subr.mxu0 0.0
    %1709 = vmatpush1.msra.mxu0 0.0
    %1710 = vmatprep.subr.mxu0 0.0
    %1711 = vmatpush1.msra.mxu0 0.0
    %1712 = vmatprep.subr.mxu0 0.0
    %1713 = vmatpush1.msra.mxu0 0.0
    %1714 = vmatprep.subr.mxu0 0.0
    %1715 = vmatpush1.msra.mxu0 0.0
    %1716 = vmatprep.subr.mxu0 0.0
    %1717 = vmatpush1.msra.mxu0 0.0
    %1718 = vmatprep.subr.mxu0 0.0
    %1719 = vmatpush1.msra.mxu0 0.0
    %1720 = vmatprep.subr.mxu0 0.0
    %1721 = vmatpush1.msra.mxu0 0.0
    %1722 = vmatprep.subr.mxu0 0.0
    %1723 = vmatpush1.msra.mxu0 0.0
    %1724 = vmatprep.subr.mxu0 0.0
    %1725 = vmatpush1.msra.mxu0 0.0
    %1726 = vmatprep.subr.mxu0 0.0
    %1727 = vmatpush1.msra.mxu0 0.0
    %1728 = vmatprep.subr.mxu0 0.0
    %1729 = vmatpush1.msra.mxu0 0.0
    %1730 = vmatprep.mubr.f32.mxu0 0.0
    %1731 = vmatmul.mubr.f32.gmra.mrb[0].mxu0 %v1593
    %v1732 = vpop.f32.mrb[0].mxu0
    %v1733 = vadd.f32 0.0, %v1732
    %v1734 = vpop.f32.mrb[0].mxu0
    %v1735 = vadd.f32 0.0, %v1734
    %1736 = vdwg.mxu0
    %v1741 = vrot.slane %v1662, 1
    %v1742 = vrot.slane %v1664, 1
    %v1743 = vrot.slane %v1733, 1
    %v1744 = vrot.slane %v1735, 1
    %v1749 = vadd.f32 %v179, %v1741
    %v1750 = vadd.f32 %v181, %v1742
    %v1751 = vadd.f32 %v250, %v1743
    %v1752 = vadd.f32 %v252, %v1744
    %v1753 = vxor.u32 %v1749, 2147483648
    %v1754 = vmul.f32 %v1753, 1.442695
    %v1755 = vpow.pop %v1754
    %v1756 = vadd.f32 %v1755, 1.0
    %v1757 = vrcp.pop %v1756
    %v1758 = vmul.f32 1.0, %v1757
    %v1759 = vxor.u32 %v1750, 2147483648
    %v1760 = vmul.f32 %v1759, 1.442695
    %v1761 = vpow.pop %v1760
    %v1762 = vadd.f32 %v1761, 1.0
    %v1763 = vrcp.pop %v1762
    %v1764 = vmul.f32 1.0, %v1763
    %v1765 = vtanh.pop %v1751
    %v1766 = vxor.u32 %v1752, 2147483648
    %v1767 = vmul.f32 %v1766, 1.442695
    %v1768 = vpow.pop %v1767
    %v1769 = vadd.f32 %v1768, 1.0
    %v1770 = vrcp.pop %v1769
    %v1771 = vmul.f32 1.0, %v1770
    %v1773 = vrot.slane %v1586, 7
    %v1775 = vmul.f32 %v1764, %v1773
    %v1776 = vmul.f32 %v1758, %v1765
    %v1777 = vadd.f32 %v1775, %v1776
    %v1778 = vtanh.pop %v1777
    %v1779 = vmul.f32 %v1771, %v1778
    %vm1780 = vcmask 261127
    %1781 = vst.msk [vmem:[#allocation2] sm:$0x80] %vm1780, %v1779
    %v1782 = vld [vmem:[#allocation2] sm:$0xff]
    %v1783 = vld [vmem:[#allocation9] sm:$0xff]
    %v1784 = vld [vmem:[#allocation9 + $0x8] sm:$0xff]
    %v1785 = vld [vmem:[#allocation9 + $0x10] sm:$0xff]
    %v1786 = vld [vmem:[#allocation9 + $0x18] sm:$0xff]
    %v1787 = vld [vmem:[%s5] sm:$0x1]
    %v1789 = vlaneseq
    %v1790 = vshrl.u32 %v1789, 7
    %v1791 = vsub.s32 0, %v1790
    %v1792 = vrot.slane %v1787, %v1791
    %v1795 = vsel %vm270, %v1782, 0
    %1797 = vmatprep.subr.mxu0 0.0
    %1798 = vmatpush1.msra.mxu0 %v1783
    %1799 = vmatprep.subr.mxu0 0.0
    %1800 = vmatpush1.msra.mxu0 %v1784
    %1801 = vmatprep.subr.mxu0 0.0
    %1802 = vmatpush1.msra.mxu0 %v1785
    %1803 = vmatprep.subr.mxu0 0.0
    %1804 = vmatpush1.msra.mxu0 %v1786
    %1805 = vmatprep.subr.mxu0 0.0
    %1806 = vmatpush1.msra.mxu0 0.0
    %1807 = vmatprep.subr.mxu0 0.0
    %1808 = vmatpush1.msra.mxu0 0.0
    %1809 = vmatprep.subr.mxu0 0.0
    %1810 = vmatpush1.msra.mxu0 0.0
    %1811 = vmatprep.subr.mxu0 0.0
    %1812 = vmatpush1.msra.mxu0 0.0
    %1813 = vmatprep.subr.mxu0 0.0
    %1814 = vmatpush1.msra.mxu0 0.0
    %1815 = vmatprep.subr.mxu0 0.0
    %1816 = vmatpush1.msra.mxu0 0.0
    %1817 = vmatprep.subr.mxu0 0.0
    %1818 = vmatpush1.msra.mxu0 0.0
    %1819 = vmatprep.subr.mxu0 0.0
    %1820 = vmatpush1.msra.mxu0 0.0
    %1821 = vmatprep.subr.mxu0 0.0
    %1822 = vmatpush1.msra.mxu0 0.0
    %1823 = vmatprep.subr.mxu0 0.0
    %1824 = vmatpush1.msra.mxu0 0.0
    %1825 = vmatprep.subr.mxu0 0.0
    %1826 = vmatpush1.msra.mxu0 0.0
    %1827 = vmatprep.subr.mxu0 0.0
    %1828 = vmatpush1.msra.mxu0 0.0
    %1829 = vmatprep.subr.mxu0 0.0
    %1830 = vmatpush1.msra.mxu0 0.0
    %1831 = vmatprep.subr.mxu0 0.0
    %1832 = vmatpush1.msra.mxu0 0.0
    %1833 = vmatprep.subr.mxu0 0.0
    %1834 = vmatpush1.msra.mxu0 0.0
    %1835 = vmatprep.subr.mxu0 0.0
    %1836 = vmatpush1.msra.mxu0 0.0
    %1837 = vmatprep.subr.mxu0 0.0
    %1838 = vmatpush1.msra.mxu0 0.0
    %1839 = vmatprep.subr.mxu0 0.0
    %1840 = vmatpush1.msra.mxu0 0.0
    %1841 = vmatprep.subr.mxu0 0.0
    %1842 = vmatpush1.msra.mxu0 0.0
    %1843 = vmatprep.subr.mxu0 0.0
    %1844 = vmatpush1.msra.mxu0 0.0
    %1845 = vmatprep.subr.mxu0 0.0
    %1846 = vmatpush1.msra.mxu0 0.0
    %1847 = vmatprep.subr.mxu0 0.0
    %1848 = vmatpush1.msra.mxu0 0.0
    %1849 = vmatprep.subr.mxu0 0.0
    %1850 = vmatpush1.msra.mxu0 0.0
    %1851 = vmatprep.subr.mxu0 0.0
    %1852 = vmatpush1.msra.mxu0 0.0
    %1853 = vmatprep.subr.mxu0 0.0
    %1854 = vmatpush1.msra.mxu0 0.0
    %1855 = vmatprep.subr.mxu0 0.0
    %1856 = vmatpush1.msra.mxu0 0.0
    %1857 = vmatprep.subr.mxu0 0.0
    %1858 = vmatpush1.msra.mxu0 0.0
    %1859 = vmatprep.subr.mxu0 0.0
    %1860 = vmatpush1.msra.mxu0 0.0
    %1861 = vmatprep.mubr.f32.mxu0 0.0
    %1862 = vmatmul.mubr.f32.gmra.mrb[0].mxu0 %v1795
    %v1863 = vpop.f32.mrb[0].mxu0
    %v1864 = vadd.f32 %v1792, %v1863
    %v1865 = vpop.f32.mrb[0].mxu0
    %1866 = vdwg.mxu0
    %1867 = vst [vmem:[#allocation11] sm:$0xff] %v1864
    // Predicated region
    $region42: #{lstm_bch_forward.1} parent=1 // pred_check
      _
    $region43: #{lstm_bch_forward.1} parent=1 // pred_check_branch
      %1869 = sbr.rel (0) target = $region45
    $region44: #{lstm_bch_forward.1} parent=1 // pred_region
      %s1871 = ssub.s32 128, 128
      %1872 = vsyncadd [#allocation5], %s1871
      %s1874 = sshll.u32 [#allocation11], 4
      %s1875 = int_to_ptr.vmem [resolvable:$true] %s1874
      %1877 = dma.vmem_to_hbm [thread:$0]  %s1875, 128, %s6, [#allocation5]
    $region45: #{lstm_bch_forward.1} parent=1 // pred_fallthru
      _
    // Predicated region
    $region46: #{lstm_bch_forward.1} parent=1 // pred_check
      _
    $region47: #{lstm_bch_forward.1} parent=1 // pred_check_branch
      %1879 = sbr.rel (0) target = $region49
    $region48: #{lstm_bch_forward.1} parent=1 // pred_region
      %1880 = dma.done [#allocation5], 128
    $region49: #{lstm_bch_forward.1} parent=1 // pred_fallthru
      _
    %1881 = vsyncpa [#allocation4], 1
    %1882 = vsyncpa [#allocation7], 1
    %1883 = vsyncpa [#allocation10], 1
    %1884 = vsyncpa [#allocation5], 1

</llo_original>
